<compile_context>
chip_gen: v7x
topology: tpu7x:2x2x1
jax: 0.10.0
libtpu: 0.0.40
codegen_flags: <defaults>
</compile_context>

<pallas_src>
import functools
import numpy as np
import jax
import jax.numpy as jnp
from jax import lax
from jax.experimental import pallas as pl
from jax.experimental.pallas import tpu as pltpu


def _fused_atrous_sep_conv_kernel(x_ref, w_ref, b_ref, o_ref, *,
                                  K, dilation, padding, H_out, W_out,
                                  batch_block):
    # x_ref: (BB, C, H, W)          unpadded input block (BB batch elements)
    # w_ref: (O, K*K*C)             combined weights (row = (kh*K+kw)*C + c)
    # b_ref: (O, 1)                 combined bias
    # o_ref: (BB, O, H_out*W_out)   lane-dense output
    BB, C, H, W = x_ref.shape
    HW = H_out * W_out

    # In-kernel zero padding: pure value-level concatenation with zero slabs
    # (stays in VMEM/vregs; no padded copy of x ever touches HBM).
    x = x_ref[...]
    if padding > 0:
        zh = jnp.zeros((BB, C, padding, W), x.dtype)
        x = jnp.concatenate([zh, x, zh], axis=2)          # (BB, C, Hp, W)
        Hp = H + 2 * padding
        zw = jnp.zeros((BB, C, Hp, padding), x.dtype)
        x = jnp.concatenate([zw, x, zw], axis=3)          # (BB, C, Hp, Wp)

    # Build the im2col RHS (K*K*C, BB*HW) from the K*K shifted slices.  The
    # concat along dim 0 is a cheap slab stack; the single (.., H, W) -> HW
    # flatten is the one unavoidable relayout and it feeds the MXU directly
    # (no VPU tap loop, no accumulator reshape on the store path).
    cols = []
    for b in range(batch_block):
        xb = x[b]                                         # (C, Hp, Wp)
        taps = []
        for kh in range(K):
            for kw in range(K):
                h0 = kh * dilation
                w0 = kw * dilation
                taps.append(xb[:, h0:h0 + H_out, w0:w0 + W_out])   # (C,H_out,W_out)
        col = jnp.concatenate(taps, axis=0).reshape(K * K * C, HW)
        cols.append(col)
    rhs = cols[0] if batch_block == 1 else jnp.concatenate(cols, axis=1)

    # One MXU matmul: (O, K*K*C) @ (K*K*C, BB*HW), f32 accumulation.
    out = jnp.dot(w_ref[...], rhs.astype(w_ref.dtype),
                  preferred_element_type=jnp.float32)     # (O, BB*HW)
    out = out + b_ref[...].astype(jnp.float32)            # (O, 1) broadcast

    # Lane-dense stores: each write is a full (O, HW)-wide unmasked store.
    for b in range(batch_block):
        o_ref[b] = out[:, b * HW:(b + 1) * HW].astype(o_ref.dtype)


def atrous_separable_conv(x, w_dw, b_dw, w_pw, b_pw, *,
                          kernel_size, stride=1, padding=0, dilation=1,
                          batch_block=None, compute_dtype=jnp.float32):
    """x: (B, C, H, W). Returns (B, O, H_out, W_out) matching the torch module."""
    B, C, H, W = x.shape
    O = w_pw.shape[0]
    K = kernel_size
    # TODO(synk): stride > 1 would need strided tap slicing; keep the assert.
    assert stride == 1, "kernel assumes stride=1"

    H_out = (H + 2 * padding - dilation * (K - 1) - 1) // stride + 1
    W_out = (W + 2 * padding - dilation * (K - 1) - 1) // stride + 1
    HW = H_out * W_out

    if batch_block is None:
        batch_block = B                     # collapse batch into one grid step
    assert B % batch_block == 0
    num_steps = B // batch_block

    # Fused weights/bias (layout plumbing / weight prep in plain JAX):
    #   w_comb[o, (kh*K+kw)*C + c] = w_pw[o, c] * w_dw[c, kh, kw]
    #   b_comb[o]                  = sum_c w_pw[o, c] * b_dw[c] + b_pw[o]
    w_comb = (w_pw[:, None, None, :] *
              jnp.transpose(w_dw, (1, 2, 0))[None, :, :, :]).reshape(O, K * K * C)
    w_comb = w_comb.astype(compute_dtype)
    b_comb = (w_pw @ b_dw + b_pw).reshape(O, 1).astype(jnp.float32)
    # NOTE: for production-size inputs, pass x as bf16 to also halve HBM traffic.

    kernel = functools.partial(_fused_atrous_sep_conv_kernel,
                               K=K, dilation=dilation, padding=padding,
                               H_out=H_out, W_out=W_out,
                               batch_block=batch_block)

    out_itemsize = jnp.dtype(x.dtype).itemsize
    cost = pl.CostEstimate(
        flops=2 * B * O * (C * K * K) * HW + B * O * HW,
        transcendentals=0,
        bytes_accessed=(x.size * x.dtype.itemsize
                        + w_comb.size * w_comb.dtype.itemsize
                        + b_comb.size * b_comb.dtype.itemsize
                        + B * O * HW * out_itemsize),
    )

    out_flat = pl.pallas_call(
        kernel,
        out_shape=jax.ShapeDtypeStruct((B, O, HW), x.dtype),
        grid_spec=pltpu.PrefetchScalarGridSpec(
            num_scalar_prefetch=0,
            grid=(num_steps,),
            in_specs=[
                pl.BlockSpec((batch_block, C, H, W), lambda g: (g, 0, 0, 0)),
                pl.BlockSpec((O, K * K * C),         lambda g: (0, 0)),
                pl.BlockSpec((O, 1),                 lambda g: (0, 0)),
            ],
            out_specs=pl.BlockSpec((batch_block, O, HW), lambda g: (g, 0, 0)),
        ),
        compiler_params=pltpu.CompilerParams(
            dimension_semantics=("parallel",)),   # independent batch blocks
        cost_estimate=cost,
    )(x, w_comb, b_comb)

    return out_flat.reshape(B, O, H_out, W_out)


def _reference(x, w_dw, b_dw, w_pw, b_pw, *, padding, dilation):
    """Pure-JAX reference matching torch semantics (NCHW)."""
    C = x.shape[1]
    O = w_pw.shape[0]
    dn = ('NCHW', 'OIHW', 'NCHW')
    y = lax.conv_general_dilated(
        x, w_dw.reshape(C, 1, w_dw.shape[1], w_dw.shape[2]),
        window_strides=(1, 1), padding=[(padding, padding), (padding, padding)],
        rhs_dilation=(dilation, dilation), feature_group_count=C,
        dimension_numbers=dn)
    y = y + b_dw.reshape(1, C, 1, 1)
    z = lax.conv_general_dilated(
        y, w_pw.reshape(O, C, 1, 1), window_strides=(1, 1),
        padding=[(0, 0), (0, 0)], dimension_numbers=dn)
    return z + b_pw.reshape(1, O, 1, 1)


if __name__ == "__main__":
    # Small shapes consistent with the module's forward.
    B, C, O = 2, 4, 8
    H = W = 16
    K, STRIDE, DIL = 3, 1, 2
    PAD = DIL  # "same"-style atrous padding

    key = jax.random.PRNGKey(0)
    k0, k1, k2, k3, k4 = jax.random.split(key, 5)

    x = jax.random.normal(k0, (B, C, H, W), jnp.float32)

    # Deterministic parameter init (kaiming_normal_ -> N(0, sqrt(2/fan_in))).
    fan_in_dw = 1 * K * K                     # groups == in_channels
    fan_in_pw = C * 1 * 1
    w_dw = jax.random.normal(k1, (C, K, K), jnp.float32) * np.sqrt(2.0 / fan_in_dw)
    w_pw = jax.random.normal(k2, (O, C), jnp.float32) * np.sqrt(2.0 / fan_in_pw)
    b_dw = jax.random.uniform(k3, (C,), jnp.float32,
                              -1.0 / np.sqrt(fan_in_dw), 1.0 / np.sqrt(fan_in_dw))
    b_pw = jax.random.uniform(k4, (O,), jnp.float32,
                              -1.0 / np.sqrt(fan_in_pw), 1.0 / np.sqrt(fan_in_pw))

    ref = _reference(x, w_dw, b_dw, w_pw, b_pw, padding=PAD, dilation=DIL)

    # f32 MXU operands: strict numerical check vs the reference.
    out = atrous_separable_conv(x, w_dw, b_dw, w_pw, b_pw,
                                kernel_size=K, stride=STRIDE,
                                padding=PAD, dilation=DIL,
                                compute_dtype=jnp.float32)
    out = jax.block_until_ready(out)
    np.testing.assert_allclose(np.asarray(out), np.asarray(ref),
                               rtol=1e-4, atol=1e-4)

    # bf16 MXU operands with f32 accumulation (2x MXU throughput on v6e/v7x);
    # looser tolerance reflects bf16 operand rounding over the 36-term sum.
    out_bf16 = atrous_separable_conv(x, w_dw, b_dw, w_pw, b_pw,
                                     kernel_size=K, stride=STRIDE,
                                     padding=PAD, dilation=DIL,
                                     compute_dtype=jnp.bfloat16)
    out_bf16 = jax.block_until_ready(out_bf16)
    np.testing.assert_allclose(np.asarray(out_bf16), np.asarray(ref),
                               rtol=5e-2, atol=5e-2)

    # Exercise the multi-step grid path (batch_block=1 -> grid=(2,), parallel).
    out_split = atrous_separable_conv(x, w_dw, b_dw, w_pw, b_pw,
                                      kernel_size=K, stride=STRIDE,
                                      padding=PAD, dilation=DIL,
                                      batch_block=1,
                                      compute_dtype=jnp.float32)
    out_split = jax.block_until_ready(out_split)
    np.testing.assert_allclose(np.asarray(out_split), np.asarray(ref),
                               rtol=1e-4, atol=1e-4)

    print("KERNEL_OK")
</pallas_src>

<mosaic_0001>
module attributes {stable_mosaic.version = 11 : i64} {
  func.func @_fused_atrous_sep_conv_kernel(%arg0: i32, %arg1: memref<2x4x16x16xf32, #tpu.memory_space<vmem>>, %arg2: memref<8x36xf32, #tpu.memory_space<vmem>>, %arg3: memref<8x1xf32, #tpu.memory_space<vmem>>, %arg4: memref<2x8x256xf32, #tpu.memory_space<vmem>>) attributes {dimension_semantics = [#tpu.dimension_semantics<parallel>], iteration_bounds = array<i64: 1>, scalar_prefetch = 0 : i64, scratch_operands = 0 : i64, tpu.core_type = #tpu.core_type<tc>, window_params = [{transform_indices = @transform_0, window_bounds = array<i64: 2, 4, 16, 16>}, {pipeline_mode = #tpu.pipeline_mode<synchronous>, transform_indices = @transform_1, window_bounds = array<i64: 8, 36>}, {pipeline_mode = #tpu.pipeline_mode<synchronous>, transform_indices = @transform_2, window_bounds = array<i64: 8, 1>}, {transform_indices = @transform_3, window_bounds = array<i64: 2, 8, 256>}]} {
    %c0 = arith.constant 0 : index
    %c0_0 = arith.constant 0 : index
    %c0_1 = arith.constant 0 : index
    %c0_2 = arith.constant 0 : index
    %0 = vector.load %arg1[%c0, %c0_0, %c0_1, %c0_2] : memref<2x4x16x16xf32, #tpu.memory_space<vmem>>, vector<2x4x16x16xf32>
    %cst = arith.constant 0.000000e+00 : f32
    %1 = vector.broadcast %cst : f32 to vector<2x4x2x16xf32>
    %2 = tpu.concatenate %1, %0, %1 in 2 : vector<2x4x2x16xf32>, vector<2x4x16x16xf32>, vector<2x4x2x16xf32> -> vector<2x4x20x16xf32>
    %cst_3 = arith.constant 0.000000e+00 : f32
    %3 = vector.broadcast %cst_3 : f32 to vector<2x4x20x2xf32>
    %4 = tpu.concatenate %3, %2, %3 in 3 : vector<2x4x20x2xf32>, vector<2x4x20x16xf32>, vector<2x4x20x2xf32> -> vector<2x4x20x20xf32>
    %5 = vector.extract_strided_slice %4 {offsets = [0, 0, 0, 0], sizes = [1, 4, 20, 20], strides = [1, 1, 1, 1]} : vector<2x4x20x20xf32> to vector<1x4x20x20xf32>
    %6 = vector.shape_cast %5 : vector<1x4x20x20xf32> to vector<4x20x20xf32>
    %7 = vector.extract_strided_slice %6 {offsets = [0, 0, 0], sizes = [4, 16, 16], strides = [1, 1, 1]} : vector<4x20x20xf32> to vector<4x16x16xf32>
    %8 = vector.extract_strided_slice %6 {offsets = [0, 0, 2], sizes = [4, 16, 16], strides = [1, 1, 1]} : vector<4x20x20xf32> to vector<4x16x16xf32>
    %9 = vector.extract_strided_slice %6 {offsets = [0, 0, 4], sizes = [4, 16, 16], strides = [1, 1, 1]} : vector<4x20x20xf32> to vector<4x16x16xf32>
    %10 = vector.extract_strided_slice %6 {offsets = [0, 2, 0], sizes = [4, 16, 16], strides = [1, 1, 1]} : vector<4x20x20xf32> to vector<4x16x16xf32>
    %11 = vector.extract_strided_slice %6 {offsets = [0, 2, 2], sizes = [4, 16, 16], strides = [1, 1, 1]} : vector<4x20x20xf32> to vector<4x16x16xf32>
    %12 = vector.extract_strided_slice %6 {offsets = [0, 2, 4], sizes = [4, 16, 16], strides = [1, 1, 1]} : vector<4x20x20xf32> to vector<4x16x16xf32>
    %13 = vector.extract_strided_slice %6 {offsets = [0, 4, 0], sizes = [4, 16, 16], strides = [1, 1, 1]} : vector<4x20x20xf32> to vector<4x16x16xf32>
    %14 = vector.extract_strided_slice %6 {offsets = [0, 4, 2], sizes = [4, 16, 16], strides = [1, 1, 1]} : vector<4x20x20xf32> to vector<4x16x16xf32>
    %15 = vector.extract_strided_slice %6 {offsets = [0, 4, 4], sizes = [4, 16, 16], strides = [1, 1, 1]} : vector<4x20x20xf32> to vector<4x16x16xf32>
    %16 = tpu.concatenate %7, %8, %9, %10, %11, %12, %13, %14, %15 in 0 : vector<4x16x16xf32>, vector<4x16x16xf32>, vector<4x16x16xf32>, vector<4x16x16xf32>, vector<4x16x16xf32>, vector<4x16x16xf32>, vector<4x16x16xf32>, vector<4x16x16xf32>, vector<4x16x16xf32> -> vector<36x16x16xf32>
    %17 = vector.shape_cast %16 : vector<36x16x16xf32> to vector<36x256xf32>
    %18 = vector.extract_strided_slice %4 {offsets = [1, 0, 0, 0], sizes = [1, 4, 20, 20], strides = [1, 1, 1, 1]} : vector<2x4x20x20xf32> to vector<1x4x20x20xf32>
    %19 = vector.shape_cast %18 : vector<1x4x20x20xf32> to vector<4x20x20xf32>
    %20 = vector.extract_strided_slice %19 {offsets = [0, 0, 0], sizes = [4, 16, 16], strides = [1, 1, 1]} : vector<4x20x20xf32> to vector<4x16x16xf32>
    %21 = vector.extract_strided_slice %19 {offsets = [0, 0, 2], sizes = [4, 16, 16], strides = [1, 1, 1]} : vector<4x20x20xf32> to vector<4x16x16xf32>
    %22 = vector.extract_strided_slice %19 {offsets = [0, 0, 4], sizes = [4, 16, 16], strides = [1, 1, 1]} : vector<4x20x20xf32> to vector<4x16x16xf32>
    %23 = vector.extract_strided_slice %19 {offsets = [0, 2, 0], sizes = [4, 16, 16], strides = [1, 1, 1]} : vector<4x20x20xf32> to vector<4x16x16xf32>
    %24 = vector.extract_strided_slice %19 {offsets = [0, 2, 2], sizes = [4, 16, 16], strides = [1, 1, 1]} : vector<4x20x20xf32> to vector<4x16x16xf32>
    %25 = vector.extract_strided_slice %19 {offsets = [0, 2, 4], sizes = [4, 16, 16], strides = [1, 1, 1]} : vector<4x20x20xf32> to vector<4x16x16xf32>
    %26 = vector.extract_strided_slice %19 {offsets = [0, 4, 0], sizes = [4, 16, 16], strides = [1, 1, 1]} : vector<4x20x20xf32> to vector<4x16x16xf32>
    %27 = vector.extract_strided_slice %19 {offsets = [0, 4, 2], sizes = [4, 16, 16], strides = [1, 1, 1]} : vector<4x20x20xf32> to vector<4x16x16xf32>
    %28 = vector.extract_strided_slice %19 {offsets = [0, 4, 4], sizes = [4, 16, 16], strides = [1, 1, 1]} : vector<4x20x20xf32> to vector<4x16x16xf32>
    %29 = tpu.concatenate %20, %21, %22, %23, %24, %25, %26, %27, %28 in 0 : vector<4x16x16xf32>, vector<4x16x16xf32>, vector<4x16x16xf32>, vector<4x16x16xf32>, vector<4x16x16xf32>, vector<4x16x16xf32>, vector<4x16x16xf32>, vector<4x16x16xf32>, vector<4x16x16xf32> -> vector<36x16x16xf32>
    %30 = vector.shape_cast %29 : vector<36x16x16xf32> to vector<36x256xf32>
    %31 = tpu.concatenate %17, %30 in 1 : vector<36x256xf32>, vector<36x256xf32> -> vector<36x512xf32>
    %c0_4 = arith.constant 0 : index
    %c0_5 = arith.constant 0 : index
    %32 = vector.load %arg2[%c0_4, %c0_5] : memref<8x36xf32, #tpu.memory_space<vmem>>, vector<8x36xf32>
    %cst_6 = arith.constant dense<0.000000e+00> : vector<8x512xf32>
    %33 = tpu.matmul %32, %31, %cst_6 {dimension_numbers = #tpu.dot_dimension_numbers<[1], [0], [0], [1], [0, 0, 1, 1], [], []>} : vector<8x36xf32>, vector<36x512xf32>, vector<8x512xf32> -> vector<8x512xf32>
    %c0_7 = arith.constant 0 : index
    %c0_8 = arith.constant 0 : index
    %34 = vector.load %arg3[%c0_7, %c0_8] : memref<8x1xf32, #tpu.memory_space<vmem>>, vector<8x1xf32>
    %35 = vector.broadcast %34 : vector<8x1xf32> to vector<8x512xf32>
    %36 = arith.addf %33, %35 : vector<8x512xf32>
    %37 = vector.extract_strided_slice %36 {offsets = [0, 0], sizes = [8, 256], strides = [1, 1]} : vector<8x512xf32> to vector<8x256xf32>
    %c0_9 = arith.constant 0 : index
    %c0_10 = arith.constant 0 : index
    %c0_11 = arith.constant 0 : index
    %38 = vector.load %arg4[%c0_9, %c0_10, %c0_11] : memref<2x8x256xf32, #tpu.memory_space<vmem>>, vector<1x8x256xf32>
    %39 = vector.shape_cast %38 : vector<1x8x256xf32> to vector<8x256xf32>
    %40 = vector.shape_cast %37 : vector<8x256xf32> to vector<1x8x256xf32>
    tpu.vector_store %arg4[%c0_9, %c0_10, %c0_11], %40 {strides = array<i32>} : memref<2x8x256xf32, #tpu.memory_space<vmem>>, vector<1x8x256xf32>,
    %41 = vector.extract_strided_slice %36 {offsets = [0, 256], sizes = [8, 256], strides = [1, 1]} : vector<8x512xf32> to vector<8x256xf32>
    %c1 = arith.constant 1 : index
    %c0_12 = arith.constant 0 : index
    %c0_13 = arith.constant 0 : index
    %42 = vector.load %arg4[%c1, %c0_12, %c0_13] : memref<2x8x256xf32, #tpu.memory_space<vmem>>, vector<1x8x256xf32>
    %43 = vector.shape_cast %42 : vector<1x8x256xf32> to vector<8x256xf32>
    %44 = vector.shape_cast %41 : vector<8x256xf32> to vector<1x8x256xf32>
    tpu.vector_store %arg4[%c1, %c0_12, %c0_13], %44 {strides = array<i32>} : memref<2x8x256xf32, #tpu.memory_space<vmem>>, vector<1x8x256xf32>,
    return
  }
  func.func @transform_0(%arg0: i32) -> (i32, i32, i32, i32) {
    %c0_i32 = arith.constant 0 : i32
    %c0_i32_0 = arith.constant 0 : i32
    %c0_i32_1 = arith.constant 0 : i32
    %c0_i32_2 = arith.constant 0 : i32
    return %arg0, %c0_i32, %c0_i32_0, %c0_i32_1 : i32, i32, i32, i32
  }
  func.func @transform_1(%arg0: i32) -> (i32, i32) {
    %c0_i32 = arith.constant 0 : i32
    %c0_i32_0 = arith.constant 0 : i32
    %c0_i32_1 = arith.constant 0 : i32
    return %c0_i32, %c0_i32_0 : i32, i32
  }
  func.func @transform_2(%arg0: i32) -> (i32, i32) {
    %c0_i32 = arith.constant 0 : i32
    %c0_i32_0 = arith.constant 0 : i32
    %c0_i32_1 = arith.constant 0 : i32
    return %c0_i32, %c0_i32_0 : i32, i32
  }
  func.func @transform_3(%arg0: i32) -> (i32, i32, i32) {
    %c0_i32 = arith.constant 0 : i32
    %c0_i32_0 = arith.constant 0 : i32
    %c0_i32_1 = arith.constant 0 : i32
    return %arg0, %c0_i32, %c0_i32_0 : i32, i32, i32
  }
}

</mosaic_0001>

<llo_original>
// kernel: tpu_custom_call.1
$region0: #{tpu_custom_call.1}
  #allocation0 [shape = 'u32[]', space=smem, size = 0x4, offset = 0x4, fixed_abs, tag = 'smem constant byte address 0x4 - core index']
  #allocation1 [shape = 'u32[144,128]{1,0:T(1,128)}', space=vmem, size = 0x12000, scoped, tag = 'internal scratch']
  %s0 = inlined_call_operand.hbm [shape: f32[2,4,16,16], index: 0, kind: input, shape index: {}]
  %s1 = inlined_call_operand.vmem [shape: f32[8,36], index: 1, kind: input, shape index: {}]
  %s2 = inlined_call_operand.vmem [shape: f32[8,1], index: 2, kind: input, shape index: {}]
  %s3 = inlined_call_operand.hbm [shape: f32[2,8,256], index: 3, kind: output, shape index: {}]
  %s4 = sld [smem:[#allocation0]]
  $region26: #{tpu_custom_call.1} parent=0
    _
  %s6 = ssub.s32 1, %s4
  %s7 = scalar_select 0, %s6, %s4
  $region1: #{tpu_custom_call.1} parent=0
    #allocation2 [shape = 'u8[65536]{0}', space=vmem, size = 0x10000, scoped, tag = 'input window, operand 0, single buffered']
    #allocation3 [shape = 's32[1]{0}', space=sflag, size = 0x4, scoped, tag = 'scoped memory for tpu_custom_call.1']
    #allocation4 [shape = 's32[1]{0}', space=sflag, size = 0x4, scoped, tag = 'scoped memory for tpu_custom_call.1']
    #allocation5 [shape = 'u8[16384]{0}', space=vmem, size = 0x4000, scoped, tag = 'output window, operand 0, single buffered']
    %8 = vsyncpa [#allocation3], 0
    %9 = vsyncpa [#allocation4], 0
    // Predicated region
    $region2: #{tpu_custom_call.1} parent=1 // pred_check
      _
    $region3: #{tpu_custom_call.1} parent=1 // pred_check_branch
      %11 = sbr.rel (0) target = $region5
    $region4: #{tpu_custom_call.1} parent=1 // pred_region
      %s13 = ssub.s32 2048, 2048
      %14 = vsyncadd [#allocation3], %s13
      %s15 = sshll.u32 [#allocation2], 4
      %s16 = int_to_ptr.vmem [resolvable:$true] %s15
      %21 = dma.hbm_to_vmem [thread:$0]  %s0, 2048, %s16, [#allocation3], 128, 128, 8
    $region5: #{tpu_custom_call.1} parent=1 // pred_fallthru
      _
    // Predicated region
    $region6: #{tpu_custom_call.1} parent=1 // pred_check
      _
    $region7: #{tpu_custom_call.1} parent=1 // pred_check_branch
      %23 = sbr.rel (0) target = $region9
    $region8: #{tpu_custom_call.1} parent=1 // pred_region
      _
    $region9: #{tpu_custom_call.1} parent=1 // pred_fallthru
      _
    // Predicated region
    $region10: #{tpu_custom_call.1} parent=1 // pred_check
      _
    $region11: #{tpu_custom_call.1} parent=1 // pred_check_branch
      %25 = sbr.rel (0) target = $region13
    $region12: #{tpu_custom_call.1} parent=1 // pred_region
      _
    $region13: #{tpu_custom_call.1} parent=1 // pred_fallthru
      _
    // Predicated region
    $region14: #{tpu_custom_call.1} parent=1 // pred_check
      _
    $region15: #{tpu_custom_call.1} parent=1 // pred_check_branch
      %27 = sbr.rel (0) target = $region17
    $region16: #{tpu_custom_call.1} parent=1 // pred_region
      %28 = dma.done [#allocation3], 2048
    $region17: #{tpu_custom_call.1} parent=1 // pred_fallthru
      _
    %v29 = vld [vmem:[#allocation2] sm:$0xff]
    %v30 = vld [vmem:[#allocation2 + $0x8] sm:$0xff]
    %v31 = vld [vmem:[#allocation2 + $0x10] sm:$0xff]
    %v32 = vld [vmem:[#allocation2 + $0x18] sm:$0xff]
    %v33 = vld [vmem:[#allocation2 + $0x20] sm:$0xff]
    %v34 = vld [vmem:[#allocation2 + $0x28] sm:$0xff]
    %v35 = vld [vmem:[#allocation2 + $0x30] sm:$0xff]
    %v36 = vld [vmem:[#allocation2 + $0x38] sm:$0xff]
    %v37 = vld [vmem:[#allocation2 + $0x40] sm:$0xff]
    %v38 = vld [vmem:[#allocation2 + $0x48] sm:$0xff]
    %v39 = vld [vmem:[#allocation2 + $0x50] sm:$0xff]
    %v40 = vld [vmem:[#allocation2 + $0x58] sm:$0xff]
    %v41 = vld [vmem:[#allocation2 + $0x60] sm:$0xff]
    %v42 = vld [vmem:[#allocation2 + $0x68] sm:$0xff]
    %v43 = vld [vmem:[#allocation2 + $0x70] sm:$0xff]
    %v44 = vld [vmem:[#allocation2 + $0x78] sm:$0xff]
    %vm61 = vcmask 1041408
    %v62 = vrot.slane %v29, 6
    %v63 = vrot.slane %v30, 6
    %v64 = vsel %vm61, %v62, %v63
    %v65 = vrot.slane %v31, 6
    %v66 = vrot.slane %v32, 6
    %v67 = vsel %vm61, %v65, %v66
    %v68 = vrot.slane %v33, 6
    %v69 = vrot.slane %v34, 6
    %v70 = vsel %vm61, %v68, %v69
    %v71 = vrot.slane %v35, 6
    %v72 = vrot.slane %v36, 6
    %v73 = vsel %vm61, %v71, %v72
    %v74 = vrot.slane %v37, 6
    %v75 = vrot.slane %v38, 6
    %v76 = vsel %vm61, %v74, %v75
    %v77 = vrot.slane %v39, 6
    %v78 = vrot.slane %v40, 6
    %v79 = vsel %vm61, %v77, %v78
    %v80 = vrot.slane %v41, 6
    %v81 = vrot.slane %v42, 6
    %v82 = vsel %vm61, %v80, %v81
    %v83 = vrot.slane %v43, 6
    %v84 = vrot.slane %v44, 6
    %v85 = vsel %vm61, %v83, %v84
    %v102 = vsel %vm61, 0.0, %v62
    %v103 = vsel %vm61, 0.0, %v65
    %v104 = vsel %vm61, 0.0, %v68
    %v105 = vsel %vm61, 0.0, %v71
    %v106 = vsel %vm61, 0.0, %v74
    %v107 = vsel %vm61, 0.0, %v77
    %v108 = vsel %vm61, 0.0, %v80
    %v109 = vsel %vm61, 0.0, %v83
    %v110 = vsel %vm61, %v63, 0.0
    %v111 = vsel %vm61, %v66, 0.0
    %v112 = vsel %vm61, %v69, 0.0
    %v113 = vsel %vm61, %v72, 0.0
    %v114 = vsel %vm61, %v75, 0.0
    %v115 = vsel %vm61, %v78, 0.0
    %v116 = vsel %vm61, %v81, 0.0
    %v117 = vsel %vm61, %v84, 0.0
    %134 = vrot.lane.b32.xlu0 %v102, 2
    %v135 = vpop.permute.xlu0 %134
    %136 = vrot.lane.b32.xlu0 %v64, 2
    %v137 = vpop.permute.xlu0 %136
    %138 = vrot.lane.b32.xlu0 %v110, 2
    %v139 = vpop.permute.xlu0 %138
    %140 = vrot.lane.b32.xlu0 %v103, 2
    %v141 = vpop.permute.xlu0 %140
    %142 = vrot.lane.b32.xlu0 %v67, 2
    %v143 = vpop.permute.xlu0 %142
    %144 = vrot.lane.b32.xlu0 %v111, 2
    %v145 = vpop.permute.xlu0 %144
    %146 = vrot.lane.b32.xlu0 %v104, 2
    %v147 = vpop.permute.xlu0 %146
    %148 = vrot.lane.b32.xlu0 %v70, 2
    %v149 = vpop.permute.xlu0 %148
    %150 = vrot.lane.b32.xlu0 %v112, 2
    %v151 = vpop.permute.xlu0 %150
    %152 = vrot.lane.b32.xlu0 %v105, 2
    %v153 = vpop.permute.xlu0 %152
    %154 = vrot.lane.b32.xlu0 %v73, 2
    %v155 = vpop.permute.xlu0 %154
    %156 = vrot.lane.b32.xlu0 %v113, 2
    %v157 = vpop.permute.xlu0 %156
    %158 = vrot.lane.b32.xlu0 %v106, 2
    %v159 = vpop.permute.xlu0 %158
    %160 = vrot.lane.b32.xlu0 %v76, 2
    %v161 = vpop.permute.xlu0 %160
    %162 = vrot.lane.b32.xlu0 %v114, 2
    %v163 = vpop.permute.xlu0 %162
    %164 = vrot.lane.b32.xlu0 %v107, 2
    %v165 = vpop.permute.xlu0 %164
    %166 = vrot.lane.b32.xlu0 %v79, 2
    %v167 = vpop.permute.xlu0 %166
    %168 = vrot.lane.b32.xlu0 %v115, 2
    %v169 = vpop.permute.xlu0 %168
    %170 = vrot.lane.b32.xlu0 %v108, 2
    %v171 = vpop.permute.xlu0 %170
    %172 = vrot.lane.b32.xlu0 %v82, 2
    %v173 = vpop.permute.xlu0 %172
    %174 = vrot.lane.b32.xlu0 %v116, 2
    %v175 = vpop.permute.xlu0 %174
    %176 = vrot.lane.b32.xlu0 %v109, 2
    %v177 = vpop.permute.xlu0 %176
    %178 = vrot.lane.b32.xlu0 %v85, 2
    %v179 = vpop.permute.xlu0 %178
    %180 = vrot.lane.b32.xlu0 %v117, 2
    %v181 = vpop.permute.xlu0 %180
    %vm206 = vcmask 15360
    %v207 = vsel %vm206, 0.0, %v135
    %v208 = vsel %vm206, 0.0, %v137
    %v209 = vsel %vm206, 0.0, %v139
    %v210 = vsel %vm206, 0.0, %v141
    %v211 = vsel %vm206, 0.0, %v143
    %v212 = vsel %vm206, 0.0, %v145
    %v213 = vsel %vm206, 0.0, %v147
    %v214 = vsel %vm206, 0.0, %v149
    %v215 = vsel %vm206, 0.0, %v151
    %v216 = vsel %vm206, 0.0, %v153
    %v217 = vsel %vm206, 0.0, %v155
    %v218 = vsel %vm206, 0.0, %v157
    %v219 = vsel %vm206, 0.0, %v159
    %v220 = vsel %vm206, 0.0, %v161
    %v221 = vsel %vm206, 0.0, %v163
    %v222 = vsel %vm206, 0.0, %v165
    %v223 = vsel %vm206, 0.0, %v167
    %v224 = vsel %vm206, 0.0, %v169
    %v225 = vsel %vm206, 0.0, %v171
    %v226 = vsel %vm206, 0.0, %v173
    %v227 = vsel %vm206, 0.0, %v175
    %v228 = vsel %vm206, 0.0, %v177
    %v229 = vsel %vm206, 0.0, %v179
    %v230 = vsel %vm206, 0.0, %v181
    %vm231 = vcmask 146432
    %v232 = vsel %vm231, %v207, 0.0
    %v233 = vsel %vm231, %v208, 0.0
    %v234 = vsel %vm231, %v209, 0.0
    %v235 = vsel %vm231, %v210, 0.0
    %v236 = vsel %vm231, %v211, 0.0
    %v237 = vsel %vm231, %v212, 0.0
    %v238 = vsel %vm231, %v213, 0.0
    %v239 = vsel %vm231, %v214, 0.0
    %v240 = vsel %vm231, %v215, 0.0
    %v241 = vsel %vm231, %v216, 0.0
    %v242 = vsel %vm231, %v217, 0.0
    %v243 = vsel %vm231, %v218, 0.0
    %v244 = vsel %vm231, %v219, 0.0
    %v245 = vsel %vm231, %v220, 0.0
    %v246 = vsel %vm231, %v221, 0.0
    %v247 = vsel %vm231, %v222, 0.0
    %v248 = vsel %vm231, %v223, 0.0
    %v249 = vsel %vm231, %v224, 0.0
    %v250 = vsel %vm231, %v225, 0.0
    %v251 = vsel %vm231, %v226, 0.0
    %v252 = vsel %vm231, %v227, 0.0
    %v253 = vsel %vm231, %v228, 0.0
    %v254 = vsel %vm231, %v229, 0.0
    %v255 = vsel %vm231, %v230, 0.0
    %264 = vrot.lane.b32.xlu0 %v232, 126
    %v265 = vpop.permute.xlu0 %264
    %266 = vrot.lane.b32.xlu0 %v233, 126
    %v267 = vpop.permute.xlu0 %266
    %268 = vrot.lane.b32.xlu0 %v235, 126
    %v269 = vpop.permute.xlu0 %268
    %270 = vrot.lane.b32.xlu0 %v236, 126
    %v271 = vpop.permute.xlu0 %270
    %272 = vrot.lane.b32.xlu0 %v238, 126
    %v273 = vpop.permute.xlu0 %272
    %274 = vrot.lane.b32.xlu0 %v239, 126
    %v275 = vpop.permute.xlu0 %274
    %276 = vrot.lane.b32.xlu0 %v241, 126
    %v277 = vpop.permute.xlu0 %276
    %278 = vrot.lane.b32.xlu0 %v242, 126
    %v279 = vpop.permute.xlu0 %278
    %288 = vrot.lane.b32.xlu0 %v232, 124
    %v289 = vpop.permute.xlu0 %288
    %290 = vrot.lane.b32.xlu0 %v233, 124
    %v291 = vpop.permute.xlu0 %290
    %292 = vrot.lane.b32.xlu0 %v235, 124
    %v293 = vpop.permute.xlu0 %292
    %294 = vrot.lane.b32.xlu0 %v236, 124
    %v295 = vpop.permute.xlu0 %294
    %296 = vrot.lane.b32.xlu0 %v238, 124
    %v297 = vpop.permute.xlu0 %296
    %298 = vrot.lane.b32.xlu0 %v239, 124
    %v299 = vpop.permute.xlu0 %298
    %300 = vrot.lane.b32.xlu0 %v241, 124
    %v301 = vpop.permute.xlu0 %300
    %302 = vrot.lane.b32.xlu0 %v242, 124
    %v303 = vpop.permute.xlu0 %302
    %vm316 = vcmask 1045504
    %v317 = vrot.slane %v232, 2
    %v318 = vrot.slane %v233, 2
    %v319 = vsel %vm316, %v317, %v318
    %v320 = vrot.slane %v234, 2
    %v321 = vsel %vm316, %v318, %v320
    %v322 = vrot.slane %v235, 2
    %v323 = vrot.slane %v236, 2
    %v324 = vsel %vm316, %v322, %v323
    %v325 = vrot.slane %v237, 2
    %v326 = vsel %vm316, %v323, %v325
    %v327 = vrot.slane %v238, 2
    %v328 = vrot.slane %v239, 2
    %v329 = vsel %vm316, %v327, %v328
    %v330 = vrot.slane %v240, 2
    %v331 = vsel %vm316, %v328, %v330
    %v332 = vrot.slane %v241, 2
    %v333 = vrot.slane %v242, 2
    %v334 = vsel %vm316, %v332, %v333
    %v335 = vrot.slane %v243, 2
    %v336 = vsel %vm316, %v333, %v335
    %345 = vrot.lane.b32.xlu0 %v319, 126
    %v346 = vpop.permute.xlu0 %345
    %347 = vrot.lane.b32.xlu0 %v321, 126
    %v348 = vpop.permute.xlu0 %347
    %349 = vrot.lane.b32.xlu0 %v324, 126
    %v350 = vpop.permute.xlu0 %349
    %351 = vrot.lane.b32.xlu0 %v326, 126
    %v352 = vpop.permute.xlu0 %351
    %353 = vrot.lane.b32.xlu0 %v329, 126
    %v354 = vpop.permute.xlu0 %353
    %355 = vrot.lane.b32.xlu0 %v331, 126
    %v356 = vpop.permute.xlu0 %355
    %357 = vrot.lane.b32.xlu0 %v334, 126
    %v358 = vpop.permute.xlu0 %357
    %359 = vrot.lane.b32.xlu0 %v336, 126
    %v360 = vpop.permute.xlu0 %359
    %369 = vrot.lane.b32.xlu0 %v319, 124
    %v370 = vpop.permute.xlu0 %369
    %371 = vrot.lane.b32.xlu0 %v321, 124
    %v372 = vpop.permute.xlu0 %371
    %373 = vrot.lane.b32.xlu0 %v324, 124
    %v374 = vpop.permute.xlu0 %373
    %375 = vrot.lane.b32.xlu0 %v326, 124
    %v376 = vpop.permute.xlu0 %375
    %377 = vrot.lane.b32.xlu0 %v329, 124
    %v378 = vpop.permute.xlu0 %377
    %379 = vrot.lane.b32.xlu0 %v331, 124
    %v380 = vpop.permute.xlu0 %379
    %381 = vrot.lane.b32.xlu0 %v334, 124
    %v382 = vpop.permute.xlu0 %381
    %383 = vrot.lane.b32.xlu0 %v336, 124
    %v384 = vpop.permute.xlu0 %383
    %vm393 = vcmask 1043456
    %v394 = vrot.slane %v232, 4
    %v395 = vrot.slane %v233, 4
    %v396 = vsel %vm393, %v394, %v395
    %v397 = vrot.slane %v234, 4
    %v398 = vsel %vm393, %v395, %v397
    %v399 = vrot.slane %v235, 4
    %v400 = vrot.slane %v236, 4
    %v401 = vsel %vm393, %v399, %v400
    %v402 = vrot.slane %v237, 4
    %v403 = vsel %vm393, %v400, %v402
    %v404 = vrot.slane %v238, 4
    %v405 = vrot.slane %v239, 4
    %v406 = vsel %vm393, %v404, %v405
    %v407 = vrot.slane %v240, 4
    %v408 = vsel %vm393, %v405, %v407
    %v409 = vrot.slane %v241, 4
    %v410 = vrot.slane %v242, 4
    %v411 = vsel %vm393, %v409, %v410
    %v412 = vrot.slane %v243, 4
    %v413 = vsel %vm393, %v410, %v412
    %422 = vrot.lane.b32.xlu0 %v396, 126
    %v423 = vpop.permute.xlu0 %422
    %424 = vrot.lane.b32.xlu0 %v398, 126
    %v425 = vpop.permute.xlu0 %424
    %426 = vrot.lane.b32.xlu0 %v401, 126
    %v427 = vpop.permute.xlu0 %426
    %428 = vrot.lane.b32.xlu0 %v403, 126
    %v429 = vpop.permute.xlu0 %428
    %430 = vrot.lane.b32.xlu0 %v406, 126
    %v431 = vpop.permute.xlu0 %430
    %432 = vrot.lane.b32.xlu0 %v408, 126
    %v433 = vpop.permute.xlu0 %432
    %434 = vrot.lane.b32.xlu0 %v411, 126
    %v435 = vpop.permute.xlu0 %434
    %436 = vrot.lane.b32.xlu0 %v413, 126
    %v437 = vpop.permute.xlu0 %436
    %446 = vrot.lane.b32.xlu0 %v396, 124
    %v447 = vpop.permute.xlu0 %446
    %448 = vrot.lane.b32.xlu0 %v398, 124
    %v449 = vpop.permute.xlu0 %448
    %450 = vrot.lane.b32.xlu0 %v401, 124
    %v451 = vpop.permute.xlu0 %450
    %452 = vrot.lane.b32.xlu0 %v403, 124
    %v453 = vpop.permute.xlu0 %452
    %454 = vrot.lane.b32.xlu0 %v406, 124
    %v455 = vpop.permute.xlu0 %454
    %456 = vrot.lane.b32.xlu0 %v408, 124
    %v457 = vpop.permute.xlu0 %456
    %458 = vrot.lane.b32.xlu0 %v411, 124
    %v459 = vpop.permute.xlu0 %458
    %460 = vrot.lane.b32.xlu0 %v413, 124
    %v461 = vpop.permute.xlu0 %460
    %v470 = vcombine.low %v232, %v238
    %v471 = vcombine.high %v232, %v238
    %v473 = vunpack.c.l.s4 1983009808
    %v474 = vunpack.c.0.s8 %v473
    %v475 = vlaneseq
    %v476 = vshrl.u32 %v475, 7
    %v477 = vsub.s32 %v474, %v476
    %v478 = vrot.slane %v470, %v477
    %v480 = vunpack.c.l.s4 1983009808
    %v481 = vunpack.c.0.s8 %v480
    %v482 = vlaneseq
    %v483 = vshrl.u32 %v482, 7
    %v484 = vsub.s32 %v481, %v483
    %v485 = vrot.slane %v471, %v484
    %v486 = vcombine.low %v235, %v241
    %v487 = vcombine.high %v235, %v241
    %v489 = vunpack.c.l.s4 1983009808
    %v490 = vunpack.c.0.s8 %v489
    %v491 = vlaneseq
    %v492 = vshrl.u32 %v491, 7
    %v493 = vsub.s32 %v490, %v492
    %v494 = vrot.slane %v486, %v493
    %v496 = vunpack.c.l.s4 1983009808
    %v497 = vunpack.c.0.s8 %v496
    %v498 = vlaneseq
    %v499 = vshrl.u32 %v498, 7
    %v500 = vsub.s32 %v497, %v499
    %v501 = vrot.slane %v487, %v500
    %v502 = vcombine.low %v265, %v273
    %v503 = vcombine.high %v265, %v273
    %v505 = vunpack.c.l.s4 1983009808
    %v506 = vunpack.c.0.s8 %v505
    %v507 = vlaneseq
    %v508 = vshrl.u32 %v507, 7
    %v509 = vsub.s32 %v506, %v508
    %v510 = vrot.slane %v502, %v509
    %v512 = vunpack.c.l.s4 1983009808
    %v513 = vunpack.c.0.s8 %v512
    %v514 = vlaneseq
    %v515 = vshrl.u32 %v514, 7
    %v516 = vsub.s32 %v513, %v515
    %v517 = vrot.slane %v503, %v516
    %v518 = vcombine.low %v269, %v277
    %v519 = vcombine.high %v269, %v277
    %v521 = vunpack.c.l.s4 1983009808
    %v522 = vunpack.c.0.s8 %v521
    %v523 = vlaneseq
    %v524 = vshrl.u32 %v523, 7
    %v525 = vsub.s32 %v522, %v524
    %v526 = vrot.slane %v518, %v525
    %v528 = vunpack.c.l.s4 1983009808
    %v529 = vunpack.c.0.s8 %v528
    %v530 = vlaneseq
    %v531 = vshrl.u32 %v530, 7
    %v532 = vsub.s32 %v529, %v531
    %v533 = vrot.slane %v519, %v532
    %v534 = vcombine.low %v478, %v494
    %v535 = vcombine.high %v478, %v494
    %v537 = vunpack.c.l.s4 1934713408
    %v538 = vunpack.c.0.s8 %v537
    %v539 = vlaneseq
    %v540 = vshrl.u32 %v539, 7
    %v541 = vsub.s32 %v538, %v540
    %v542 = vrot.slane %v534, %v541
    %v544 = vunpack.c.l.s4 1934713408
    %v545 = vunpack.c.0.s8 %v544
    %v546 = vlaneseq
    %v547 = vshrl.u32 %v546, 7
    %v548 = vsub.s32 %v545, %v547
    %v549 = vrot.slane %v535, %v548
    %v550 = vcombine.low %v485, %v501
    %v551 = vcombine.high %v485, %v501
    %v553 = vunpack.c.l.s4 1934713408
    %v554 = vunpack.c.0.s8 %v553
    %v555 = vlaneseq
    %v556 = vshrl.u32 %v555, 7
    %v557 = vsub.s32 %v554, %v556
    %v558 = vrot.slane %v550, %v557
    %v560 = vunpack.c.l.s4 1934713408
    %v561 = vunpack.c.0.s8 %v560
    %v562 = vlaneseq
    %v563 = vshrl.u32 %v562, 7
    %v564 = vsub.s32 %v561, %v563
    %v565 = vrot.slane %v551, %v564
    %v566 = vcombine.low %v510, %v526
    %v567 = vcombine.high %v510, %v526
    %v569 = vunpack.c.l.s4 1934713408
    %v570 = vunpack.c.0.s8 %v569
    %v571 = vlaneseq
    %v572 = vshrl.u32 %v571, 7
    %v573 = vsub.s32 %v570, %v572
    %v574 = vrot.slane %v566, %v573
    %v576 = vunpack.c.l.s4 1934713408
    %v577 = vunpack.c.0.s8 %v576
    %v578 = vlaneseq
    %v579 = vshrl.u32 %v578, 7
    %v580 = vsub.s32 %v577, %v579
    %v581 = vrot.slane %v567, %v580
    %v582 = vcombine.low %v517, %v533
    %v583 = vcombine.high %v517, %v533
    %v585 = vunpack.c.l.s4 1934713408
    %v586 = vunpack.c.0.s8 %v585
    %v587 = vlaneseq
    %v588 = vshrl.u32 %v587, 7
    %v589 = vsub.s32 %v586, %v588
    %v590 = vrot.slane %v582, %v589
    %v592 = vunpack.c.l.s4 1934713408
    %v593 = vunpack.c.0.s8 %v592
    %v594 = vlaneseq
    %v595 = vshrl.u32 %v594, 7
    %v596 = vsub.s32 %v593, %v595
    %v597 = vrot.slane %v583, %v596
    %v598 = vcombine.low %v542, %v574
    %v599 = vcombine.high %v542, %v574
    %v600 = vcombine.low %v549, %v581
    %v601 = vcombine.high %v549, %v581
    %v602 = vcombine.low %v558, %v590
    %v603 = vcombine.high %v558, %v590
    %v604 = vcombine.low %v565, %v597
    %v605 = vcombine.high %v565, %v597
    %v606 = vcombine.low %v289, %v297
    %v607 = vcombine.high %v289, %v297
    %v609 = vunpack.c.l.s4 1983009808
    %v610 = vunpack.c.0.s8 %v609
    %v611 = vlaneseq
    %v612 = vshrl.u32 %v611, 7
    %v613 = vsub.s32 %v610, %v612
    %v614 = vrot.slane %v606, %v613
    %v616 = vunpack.c.l.s4 1983009808
    %v617 = vunpack.c.0.s8 %v616
    %v618 = vlaneseq
    %v619 = vshrl.u32 %v618, 7
    %v620 = vsub.s32 %v617, %v619
    %v621 = vrot.slane %v607, %v620
    %v622 = vcombine.low %v293, %v301
    %v623 = vcombine.high %v293, %v301
    %v625 = vunpack.c.l.s4 1983009808
    %v626 = vunpack.c.0.s8 %v625
    %v627 = vlaneseq
    %v628 = vshrl.u32 %v627, 7
    %v629 = vsub.s32 %v626, %v628
    %v630 = vrot.slane %v622, %v629
    %v632 = vunpack.c.l.s4 1983009808
    %v633 = vunpack.c.0.s8 %v632
    %v634 = vlaneseq
    %v635 = vshrl.u32 %v634, 7
    %v636 = vsub.s32 %v633, %v635
    %v637 = vrot.slane %v623, %v636
    %v638 = vcombine.low %v319, %v329
    %v639 = vcombine.high %v319, %v329
    %v641 = vunpack.c.l.s4 1983009808
    %v642 = vunpack.c.0.s8 %v641
    %v643 = vlaneseq
    %v644 = vshrl.u32 %v643, 7
    %v645 = vsub.s32 %v642, %v644
    %v646 = vrot.slane %v638, %v645
    %v648 = vunpack.c.l.s4 1983009808
    %v649 = vunpack.c.0.s8 %v648
    %v650 = vlaneseq
    %v651 = vshrl.u32 %v650, 7
    %v652 = vsub.s32 %v649, %v651
    %v653 = vrot.slane %v639, %v652
    %v654 = vcombine.low %v324, %v334
    %v655 = vcombine.high %v324, %v334
    %v657 = vunpack.c.l.s4 1983009808
    %v658 = vunpack.c.0.s8 %v657
    %v659 = vlaneseq
    %v660 = vshrl.u32 %v659, 7
    %v661 = vsub.s32 %v658, %v660
    %v662 = vrot.slane %v654, %v661
    %v664 = vunpack.c.l.s4 1983009808
    %v665 = vunpack.c.0.s8 %v664
    %v666 = vlaneseq
    %v667 = vshrl.u32 %v666, 7
    %v668 = vsub.s32 %v665, %v667
    %v669 = vrot.slane %v655, %v668
    %v670 = vcombine.low %v614, %v630
    %v671 = vcombine.high %v614, %v630
    %v673 = vunpack.c.l.s4 1934713408
    %v674 = vunpack.c.0.s8 %v673
    %v675 = vlaneseq
    %v676 = vshrl.u32 %v675, 7
    %v677 = vsub.s32 %v674, %v676
    %v678 = vrot.slane %v670, %v677
    %v680 = vunpack.c.l.s4 1934713408
    %v681 = vunpack.c.0.s8 %v680
    %v682 = vlaneseq
    %v683 = vshrl.u32 %v682, 7
    %v684 = vsub.s32 %v681, %v683
    %v685 = vrot.slane %v671, %v684
    %v686 = vcombine.low %v621, %v637
    %v687 = vcombine.high %v621, %v637
    %v689 = vunpack.c.l.s4 1934713408
    %v690 = vunpack.c.0.s8 %v689
    %v691 = vlaneseq
    %v692 = vshrl.u32 %v691, 7
    %v693 = vsub.s32 %v690, %v692
    %v694 = vrot.slane %v686, %v693
    %v696 = vunpack.c.l.s4 1934713408
    %v697 = vunpack.c.0.s8 %v696
    %v698 = vlaneseq
    %v699 = vshrl.u32 %v698, 7
    %v700 = vsub.s32 %v697, %v699
    %v701 = vrot.slane %v687, %v700
    %v702 = vcombine.low %v646, %v662
    %v703 = vcombine.high %v646, %v662
    %v705 = vunpack.c.l.s4 1934713408
    %v706 = vunpack.c.0.s8 %v705
    %v707 = vlaneseq
    %v708 = vshrl.u32 %v707, 7
    %v709 = vsub.s32 %v706, %v708
    %v710 = vrot.slane %v702, %v709
    %v712 = vunpack.c.l.s4 1934713408
    %v713 = vunpack.c.0.s8 %v712
    %v714 = vlaneseq
    %v715 = vshrl.u32 %v714, 7
    %v716 = vsub.s32 %v713, %v715
    %v717 = vrot.slane %v703, %v716
    %v718 = vcombine.low %v653, %v669
    %v719 = vcombine.high %v653, %v669
    %v721 = vunpack.c.l.s4 1934713408
    %v722 = vunpack.c.0.s8 %v721
    %v723 = vlaneseq
    %v724 = vshrl.u32 %v723, 7
    %v725 = vsub.s32 %v722, %v724
    %v726 = vrot.slane %v718, %v725
    %v728 = vunpack.c.l.s4 1934713408
    %v729 = vunpack.c.0.s8 %v728
    %v730 = vlaneseq
    %v731 = vshrl.u32 %v730, 7
    %v732 = vsub.s32 %v729, %v731
    %v733 = vrot.slane %v719, %v732
    %v734 = vcombine.low %v678, %v710
    %v735 = vcombine.high %v678, %v710
    %v736 = vcombine.low %v685, %v717
    %v737 = vcombine.high %v685, %v717
    %v738 = vcombine.low %v694, %v726
    %v739 = vcombine.high %v694, %v726
    %v740 = vcombine.low %v701, %v733
    %v741 = vcombine.high %v701, %v733
    %v742 = vcombine.low %v346, %v354
    %v743 = vcombine.high %v346, %v354
    %v745 = vunpack.c.l.s4 1983009808
    %v746 = vunpack.c.0.s8 %v745
    %v747 = vlaneseq
    %v748 = vshrl.u32 %v747, 7
    %v749 = vsub.s32 %v746, %v748
    %v750 = vrot.slane %v742, %v749
    %v752 = vunpack.c.l.s4 1983009808
    %v753 = vunpack.c.0.s8 %v752
    %v754 = vlaneseq
    %v755 = vshrl.u32 %v754, 7
    %v756 = vsub.s32 %v753, %v755
    %v757 = vrot.slane %v743, %v756
    %v758 = vcombine.low %v350, %v358
    %v759 = vcombine.high %v350, %v358
    %v761 = vunpack.c.l.s4 1983009808
    %v762 = vunpack.c.0.s8 %v761
    %v763 = vlaneseq
    %v764 = vshrl.u32 %v763, 7
    %v765 = vsub.s32 %v762, %v764
    %v766 = vrot.slane %v758, %v765
    %v768 = vunpack.c.l.s4 1983009808
    %v769 = vunpack.c.0.s8 %v768
    %v770 = vlaneseq
    %v771 = vshrl.u32 %v770, 7
    %v772 = vsub.s32 %v769, %v771
    %v773 = vrot.slane %v759, %v772
    %v774 = vcombine.low %v370, %v378
    %v775 = vcombine.high %v370, %v378
    %v777 = vunpack.c.l.s4 1983009808
    %v778 = vunpack.c.0.s8 %v777
    %v779 = vlaneseq
    %v780 = vshrl.u32 %v779, 7
    %v781 = vsub.s32 %v778, %v780
    %v782 = vrot.slane %v774, %v781
    %v784 = vunpack.c.l.s4 1983009808
    %v785 = vunpack.c.0.s8 %v784
    %v786 = vlaneseq
    %v787 = vshrl.u32 %v786, 7
    %v788 = vsub.s32 %v785, %v787
    %v789 = vrot.slane %v775, %v788
    %v790 = vcombine.low %v374, %v382
    %v791 = vcombine.high %v374, %v382
    %v793 = vunpack.c.l.s4 1983009808
    %v794 = vunpack.c.0.s8 %v793
    %v795 = vlaneseq
    %v796 = vshrl.u32 %v795, 7
    %v797 = vsub.s32 %v794, %v796
    %v798 = vrot.slane %v790, %v797
    %v800 = vunpack.c.l.s4 1983009808
    %v801 = vunpack.c.0.s8 %v800
    %v802 = vlaneseq
    %v803 = vshrl.u32 %v802, 7
    %v804 = vsub.s32 %v801, %v803
    %v805 = vrot.slane %v791, %v804
    %v806 = vcombine.low %v750, %v766
    %v807 = vcombine.high %v750, %v766
    %v809 = vunpack.c.l.s4 1934713408
    %v810 = vunpack.c.0.s8 %v809
    %v811 = vlaneseq
    %v812 = vshrl.u32 %v811, 7
    %v813 = vsub.s32 %v810, %v812
    %v814 = vrot.slane %v806, %v813
    %v816 = vunpack.c.l.s4 1934713408
    %v817 = vunpack.c.0.s8 %v816
    %v818 = vlaneseq
    %v819 = vshrl.u32 %v818, 7
    %v820 = vsub.s32 %v817, %v819
    %v821 = vrot.slane %v807, %v820
    %v822 = vcombine.low %v757, %v773
    %v823 = vcombine.high %v757, %v773
    %v825 = vunpack.c.l.s4 1934713408
    %v826 = vunpack.c.0.s8 %v825
    %v827 = vlaneseq
    %v828 = vshrl.u32 %v827, 7
    %v829 = vsub.s32 %v826, %v828
    %v830 = vrot.slane %v822, %v829
    %v832 = vunpack.c.l.s4 1934713408
    %v833 = vunpack.c.0.s8 %v832
    %v834 = vlaneseq
    %v835 = vshrl.u32 %v834, 7
    %v836 = vsub.s32 %v833, %v835
    %v837 = vrot.slane %v823, %v836
    %v838 = vcombine.low %v782, %v798
    %v839 = vcombine.high %v782, %v798
    %v841 = vunpack.c.l.s4 1934713408
    %v842 = vunpack.c.0.s8 %v841
    %v843 = vlaneseq
    %v844 = vshrl.u32 %v843, 7
    %v845 = vsub.s32 %v842, %v844
    %v846 = vrot.slane %v838, %v845
    %v848 = vunpack.c.l.s4 1934713408
    %v849 = vunpack.c.0.s8 %v848
    %v850 = vlaneseq
    %v851 = vshrl.u32 %v850, 7
    %v852 = vsub.s32 %v849, %v851
    %v853 = vrot.slane %v839, %v852
    %v854 = vcombine.low %v789, %v805
    %v855 = vcombine.high %v789, %v805
    %v857 = vunpack.c.l.s4 1934713408
    %v858 = vunpack.c.0.s8 %v857
    %v859 = vlaneseq
    %v860 = vshrl.u32 %v859, 7
    %v861 = vsub.s32 %v858, %v860
    %v862 = vrot.slane %v854, %v861
    %v864 = vunpack.c.l.s4 1934713408
    %v865 = vunpack.c.0.s8 %v864
    %v866 = vlaneseq
    %v867 = vshrl.u32 %v866, 7
    %v868 = vsub.s32 %v865, %v867
    %v869 = vrot.slane %v855, %v868
    %v870 = vcombine.low %v814, %v846
    %v871 = vcombine.high %v814, %v846
    %v872 = vcombine.low %v821, %v853
    %v873 = vcombine.high %v821, %v853
    %v874 = vcombine.low %v830, %v862
    %v875 = vcombine.high %v830, %v862
    %v876 = vcombine.low %v837, %v869
    %v877 = vcombine.high %v837, %v869
    %v878 = vcombine.low %v396, %v406
    %v879 = vcombine.high %v396, %v406
    %v881 = vunpack.c.l.s4 1983009808
    %v882 = vunpack.c.0.s8 %v881
    %v883 = vlaneseq
    %v884 = vshrl.u32 %v883, 7
    %v885 = vsub.s32 %v882, %v884
    %v886 = vrot.slane %v878, %v885
    %v888 = vunpack.c.l.s4 1983009808
    %v889 = vunpack.c.0.s8 %v888
    %v890 = vlaneseq
    %v891 = vshrl.u32 %v890, 7
    %v892 = vsub.s32 %v889, %v891
    %v893 = vrot.slane %v879, %v892
    %v894 = vcombine.low %v401, %v411
    %v895 = vcombine.high %v401, %v411
    %v897 = vunpack.c.l.s4 1983009808
    %v898 = vunpack.c.0.s8 %v897
    %v899 = vlaneseq
    %v900 = vshrl.u32 %v899, 7
    %v901 = vsub.s32 %v898, %v900
    %v902 = vrot.slane %v894, %v901
    %v904 = vunpack.c.l.s4 1983009808
    %v905 = vunpack.c.0.s8 %v904
    %v906 = vlaneseq
    %v907 = vshrl.u32 %v906, 7
    %v908 = vsub.s32 %v905, %v907
    %v909 = vrot.slane %v895, %v908
    %v910 = vcombine.low %v423, %v431
    %v911 = vcombine.high %v423, %v431
    %v913 = vunpack.c.l.s4 1983009808
    %v914 = vunpack.c.0.s8 %v913
    %v915 = vlaneseq
    %v916 = vshrl.u32 %v915, 7
    %v917 = vsub.s32 %v914, %v916
    %v918 = vrot.slane %v910, %v917
    %v920 = vunpack.c.l.s4 1983009808
    %v921 = vunpack.c.0.s8 %v920
    %v922 = vlaneseq
    %v923 = vshrl.u32 %v922, 7
    %v924 = vsub.s32 %v921, %v923
    %v925 = vrot.slane %v911, %v924
    %v926 = vcombine.low %v427, %v435
    %v927 = vcombine.high %v427, %v435
    %v929 = vunpack.c.l.s4 1983009808
    %v930 = vunpack.c.0.s8 %v929
    %v931 = vlaneseq
    %v932 = vshrl.u32 %v931, 7
    %v933 = vsub.s32 %v930, %v932
    %v934 = vrot.slane %v926, %v933
    %v936 = vunpack.c.l.s4 1983009808
    %v937 = vunpack.c.0.s8 %v936
    %v938 = vlaneseq
    %v939 = vshrl.u32 %v938, 7
    %v940 = vsub.s32 %v937, %v939
    %v941 = vrot.slane %v927, %v940
    %v942 = vcombine.low %v886, %v902
    %v943 = vcombine.high %v886, %v902
    %v945 = vunpack.c.l.s4 1934713408
    %v946 = vunpack.c.0.s8 %v945
    %v947 = vlaneseq
    %v948 = vshrl.u32 %v947, 7
    %v949 = vsub.s32 %v946, %v948
    %v950 = vrot.slane %v942, %v949
    %v952 = vunpack.c.l.s4 1934713408
    %v953 = vunpack.c.0.s8 %v952
    %v954 = vlaneseq
    %v955 = vshrl.u32 %v954, 7
    %v956 = vsub.s32 %v953, %v955
    %v957 = vrot.slane %v943, %v956
    %v958 = vcombine.low %v893, %v909
    %v959 = vcombine.high %v893, %v909
    %v961 = vunpack.c.l.s4 1934713408
    %v962 = vunpack.c.0.s8 %v961
    %v963 = vlaneseq
    %v964 = vshrl.u32 %v963, 7
    %v965 = vsub.s32 %v962, %v964
    %v966 = vrot.slane %v958, %v965
    %v968 = vunpack.c.l.s4 1934713408
    %v969 = vunpack.c.0.s8 %v968
    %v970 = vlaneseq
    %v971 = vshrl.u32 %v970, 7
    %v972 = vsub.s32 %v969, %v971
    %v973 = vrot.slane %v959, %v972
    %v974 = vcombine.low %v918, %v934
    %v975 = vcombine.high %v918, %v934
    %v977 = vunpack.c.l.s4 1934713408
    %v978 = vunpack.c.0.s8 %v977
    %v979 = vlaneseq
    %v980 = vshrl.u32 %v979, 7
    %v981 = vsub.s32 %v978, %v980
    %v982 = vrot.slane %v974, %v981
    %v984 = vunpack.c.l.s4 1934713408
    %v985 = vunpack.c.0.s8 %v984
    %v986 = vlaneseq
    %v987 = vshrl.u32 %v986, 7
    %v988 = vsub.s32 %v985, %v987
    %v989 = vrot.slane %v975, %v988
    %v990 = vcombine.low %v925, %v941
    %v991 = vcombine.high %v925, %v941
    %v993 = vunpack.c.l.s4 1934713408
    %v994 = vunpack.c.0.s8 %v993
    %v995 = vlaneseq
    %v996 = vshrl.u32 %v995, 7
    %v997 = vsub.s32 %v994, %v996
    %v998 = vrot.slane %v990, %v997
    %v1000 = vunpack.c.l.s4 1934713408
    %v1001 = vunpack.c.0.s8 %v1000
    %v1002 = vlaneseq
    %v1003 = vshrl.u32 %v1002, 7
    %v1004 = vsub.s32 %v1001, %v1003
    %v1005 = vrot.slane %v991, %v1004
    %v1006 = vcombine.low %v950, %v982
    %v1007 = vcombine.high %v950, %v982
    %v1008 = vcombine.low %v957, %v989
    %v1009 = vcombine.high %v957, %v989
    %v1010 = vcombine.low %v966, %v998
    %v1011 = vcombine.high %v966, %v998
    %v1012 = vcombine.low %v973, %v1005
    %v1013 = vcombine.high %v973, %v1005
    %v1014 = vcombine.low %v447, %v455
    %v1015 = vcombine.high %v447, %v455
    %v1017 = vunpack.c.l.s4 1983009808
    %v1018 = vunpack.c.0.s8 %v1017
    %v1019 = vlaneseq
    %v1020 = vshrl.u32 %v1019, 7
    %v1021 = vsub.s32 %v1018, %v1020
    %v1022 = vrot.slane %v1014, %v1021
    %v1024 = vunpack.c.l.s4 1983009808
    %v1025 = vunpack.c.0.s8 %v1024
    %v1026 = vlaneseq
    %v1027 = vshrl.u32 %v1026, 7
    %v1028 = vsub.s32 %v1025, %v1027
    %v1029 = vrot.slane %v1015, %v1028
    %v1030 = vcombine.low %v451, %v459
    %v1031 = vcombine.high %v451, %v459
    %v1033 = vunpack.c.l.s4 1983009808
    %v1034 = vunpack.c.0.s8 %v1033
    %v1035 = vlaneseq
    %v1036 = vshrl.u32 %v1035, 7
    %v1037 = vsub.s32 %v1034, %v1036
    %v1038 = vrot.slane %v1030, %v1037
    %v1040 = vunpack.c.l.s4 1983009808
    %v1041 = vunpack.c.0.s8 %v1040
    %v1042 = vlaneseq
    %v1043 = vshrl.u32 %v1042, 7
    %v1044 = vsub.s32 %v1041, %v1043
    %v1045 = vrot.slane %v1031, %v1044
    %v1046 = vcombine.low %v1022, %v1038
    %v1047 = vcombine.high %v1022, %v1038
    %v1049 = vunpack.c.l.s4 1934713408
    %v1050 = vunpack.c.0.s8 %v1049
    %v1051 = vlaneseq
    %v1052 = vshrl.u32 %v1051, 7
    %v1053 = vsub.s32 %v1050, %v1052
    %v1054 = vrot.slane %v1046, %v1053
    %v1056 = vunpack.c.l.s4 1934713408
    %v1057 = vunpack.c.0.s8 %v1056
    %v1058 = vlaneseq
    %v1059 = vshrl.u32 %v1058, 7
    %v1060 = vsub.s32 %v1057, %v1059
    %v1061 = vrot.slane %v1047, %v1060
    %v1062 = vcombine.low %v1029, %v1045
    %v1063 = vcombine.high %v1029, %v1045
    %v1065 = vunpack.c.l.s4 1934713408
    %v1066 = vunpack.c.0.s8 %v1065
    %v1067 = vlaneseq
    %v1068 = vshrl.u32 %v1067, 7
    %v1069 = vsub.s32 %v1066, %v1068
    %v1070 = vrot.slane %v1062, %v1069
    %v1072 = vunpack.c.l.s4 1934713408
    %v1073 = vunpack.c.0.s8 %v1072
    %v1074 = vlaneseq
    %v1075 = vshrl.u32 %v1074, 7
    %v1076 = vsub.s32 %v1073, %v1075
    %v1077 = vrot.slane %v1063, %v1076
    %v1078 = vcombine.high %v1054, 0.0
    %v1079 = vcombine.high %v1061, 0.0
    %v1080 = vcombine.high %v1070, 0.0
    %v1081 = vcombine.high %v1077, 0.0
    %v1082 = vcombine.low %v233, %v239
    %v1083 = vcombine.high %v233, %v239
    %v1085 = vunpack.c.l.s4 1983009808
    %v1086 = vunpack.c.0.s8 %v1085
    %v1087 = vlaneseq
    %v1088 = vshrl.u32 %v1087, 7
    %v1089 = vsub.s32 %v1086, %v1088
    %v1090 = vrot.slane %v1082, %v1089
    %v1092 = vunpack.c.l.s4 1983009808
    %v1093 = vunpack.c.0.s8 %v1092
    %v1094 = vlaneseq
    %v1095 = vshrl.u32 %v1094, 7
    %v1096 = vsub.s32 %v1093, %v1095
    %v1097 = vrot.slane %v1083, %v1096
    %v1098 = vcombine.low %v236, %v242
    %v1099 = vcombine.high %v236, %v242
    %v1101 = vunpack.c.l.s4 1983009808
    %v1102 = vunpack.c.0.s8 %v1101
    %v1103 = vlaneseq
    %v1104 = vshrl.u32 %v1103, 7
    %v1105 = vsub.s32 %v1102, %v1104
    %v1106 = vrot.slane %v1098, %v1105
    %v1108 = vunpack.c.l.s4 1983009808
    %v1109 = vunpack.c.0.s8 %v1108
    %v1110 = vlaneseq
    %v1111 = vshrl.u32 %v1110, 7
    %v1112 = vsub.s32 %v1109, %v1111
    %v1113 = vrot.slane %v1099, %v1112
    %v1114 = vcombine.low %v267, %v275
    %v1115 = vcombine.high %v267, %v275
    %v1117 = vunpack.c.l.s4 1983009808
    %v1118 = vunpack.c.0.s8 %v1117
    %v1119 = vlaneseq
    %v1120 = vshrl.u32 %v1119, 7
    %v1121 = vsub.s32 %v1118, %v1120
    %v1122 = vrot.slane %v1114, %v1121
    %v1124 = vunpack.c.l.s4 1983009808
    %v1125 = vunpack.c.0.s8 %v1124
    %v1126 = vlaneseq
    %v1127 = vshrl.u32 %v1126, 7
    %v1128 = vsub.s32 %v1125, %v1127
    %v1129 = vrot.slane %v1115, %v1128
    %v1130 = vcombine.low %v271, %v279
    %v1131 = vcombine.high %v271, %v279
    %v1133 = vunpack.c.l.s4 1983009808
    %v1134 = vunpack.c.0.s8 %v1133
    %v1135 = vlaneseq
    %v1136 = vshrl.u32 %v1135, 7
    %v1137 = vsub.s32 %v1134, %v1136
    %v1138 = vrot.slane %v1130, %v1137
    %v1140 = vunpack.c.l.s4 1983009808
    %v1141 = vunpack.c.0.s8 %v1140
    %v1142 = vlaneseq
    %v1143 = vshrl.u32 %v1142, 7
    %v1144 = vsub.s32 %v1141, %v1143
    %v1145 = vrot.slane %v1131, %v1144
    %v1146 = vcombine.low %v1090, %v1106
    %v1147 = vcombine.high %v1090, %v1106
    %v1149 = vunpack.c.l.s4 1934713408
    %v1150 = vunpack.c.0.s8 %v1149
    %v1151 = vlaneseq
    %v1152 = vshrl.u32 %v1151, 7
    %v1153 = vsub.s32 %v1150, %v1152
    %v1154 = vrot.slane %v1146, %v1153
    %v1156 = vunpack.c.l.s4 1934713408
    %v1157 = vunpack.c.0.s8 %v1156
    %v1158 = vlaneseq
    %v1159 = vshrl.u32 %v1158, 7
    %v1160 = vsub.s32 %v1157, %v1159
    %v1161 = vrot.slane %v1147, %v1160
    %v1162 = vcombine.low %v1097, %v1113
    %v1163 = vcombine.high %v1097, %v1113
    %v1165 = vunpack.c.l.s4 1934713408
    %v1166 = vunpack.c.0.s8 %v1165
    %v1167 = vlaneseq
    %v1168 = vshrl.u32 %v1167, 7
    %v1169 = vsub.s32 %v1166, %v1168
    %v1170 = vrot.slane %v1162, %v1169
    %v1172 = vunpack.c.l.s4 1934713408
    %v1173 = vunpack.c.0.s8 %v1172
    %v1174 = vlaneseq
    %v1175 = vshrl.u32 %v1174, 7
    %v1176 = vsub.s32 %v1173, %v1175
    %v1177 = vrot.slane %v1163, %v1176
    %v1178 = vcombine.low %v1122, %v1138
    %v1179 = vcombine.high %v1122, %v1138
    %v1181 = vunpack.c.l.s4 1934713408
    %v1182 = vunpack.c.0.s8 %v1181
    %v1183 = vlaneseq
    %v1184 = vshrl.u32 %v1183, 7
    %v1185 = vsub.s32 %v1182, %v1184
    %v1186 = vrot.slane %v1178, %v1185
    %v1188 = vunpack.c.l.s4 1934713408
    %v1189 = vunpack.c.0.s8 %v1188
    %v1190 = vlaneseq
    %v1191 = vshrl.u32 %v1190, 7
    %v1192 = vsub.s32 %v1189, %v1191
    %v1193 = vrot.slane %v1179, %v1192
    %v1194 = vcombine.low %v1129, %v1145
    %v1195 = vcombine.high %v1129, %v1145
    %v1197 = vunpack.c.l.s4 1934713408
    %v1198 = vunpack.c.0.s8 %v1197
    %v1199 = vlaneseq
    %v1200 = vshrl.u32 %v1199, 7
    %v1201 = vsub.s32 %v1198, %v1200
    %v1202 = vrot.slane %v1194, %v1201
    %v1204 = vunpack.c.l.s4 1934713408
    %v1205 = vunpack.c.0.s8 %v1204
    %v1206 = vlaneseq
    %v1207 = vshrl.u32 %v1206, 7
    %v1208 = vsub.s32 %v1205, %v1207
    %v1209 = vrot.slane %v1195, %v1208
    %v1210 = vcombine.low %v1154, %v1186
    %v1211 = vcombine.high %v1154, %v1186
    %v1212 = vcombine.low %v1161, %v1193
    %v1213 = vcombine.high %v1161, %v1193
    %v1214 = vcombine.low %v1170, %v1202
    %v1215 = vcombine.high %v1170, %v1202
    %v1216 = vcombine.low %v1177, %v1209
    %v1217 = vcombine.high %v1177, %v1209
    %v1218 = vcombine.low %v291, %v299
    %v1219 = vcombine.high %v291, %v299
    %v1221 = vunpack.c.l.s4 1983009808
    %v1222 = vunpack.c.0.s8 %v1221
    %v1223 = vlaneseq
    %v1224 = vshrl.u32 %v1223, 7
    %v1225 = vsub.s32 %v1222, %v1224
    %v1226 = vrot.slane %v1218, %v1225
    %v1228 = vunpack.c.l.s4 1983009808
    %v1229 = vunpack.c.0.s8 %v1228
    %v1230 = vlaneseq
    %v1231 = vshrl.u32 %v1230, 7
    %v1232 = vsub.s32 %v1229, %v1231
    %v1233 = vrot.slane %v1219, %v1232
    %v1234 = vcombine.low %v295, %v303
    %v1235 = vcombine.high %v295, %v303
    %v1237 = vunpack.c.l.s4 1983009808
    %v1238 = vunpack.c.0.s8 %v1237
    %v1239 = vlaneseq
    %v1240 = vshrl.u32 %v1239, 7
    %v1241 = vsub.s32 %v1238, %v1240
    %v1242 = vrot.slane %v1234, %v1241
    %v1244 = vunpack.c.l.s4 1983009808
    %v1245 = vunpack.c.0.s8 %v1244
    %v1246 = vlaneseq
    %v1247 = vshrl.u32 %v1246, 7
    %v1248 = vsub.s32 %v1245, %v1247
    %v1249 = vrot.slane %v1235, %v1248
    %v1250 = vcombine.low %v321, %v331
    %v1251 = vcombine.high %v321, %v331
    %v1253 = vunpack.c.l.s4 1983009808
    %v1254 = vunpack.c.0.s8 %v1253
    %v1255 = vlaneseq
    %v1256 = vshrl.u32 %v1255, 7
    %v1257 = vsub.s32 %v1254, %v1256
    %v1258 = vrot.slane %v1250, %v1257
    %v1260 = vunpack.c.l.s4 1983009808
    %v1261 = vunpack.c.0.s8 %v1260
    %v1262 = vlaneseq
    %v1263 = vshrl.u32 %v1262, 7
    %v1264 = vsub.s32 %v1261, %v1263
    %v1265 = vrot.slane %v1251, %v1264
    %v1266 = vcombine.low %v326, %v336
    %v1267 = vcombine.high %v326, %v336
    %v1269 = vunpack.c.l.s4 1983009808
    %v1270 = vunpack.c.0.s8 %v1269
    %v1271 = vlaneseq
    %v1272 = vshrl.u32 %v1271, 7
    %v1273 = vsub.s32 %v1270, %v1272
    %v1274 = vrot.slane %v1266, %v1273
    %v1276 = vunpack.c.l.s4 1983009808
    %v1277 = vunpack.c.0.s8 %v1276
    %v1278 = vlaneseq
    %v1279 = vshrl.u32 %v1278, 7
    %v1280 = vsub.s32 %v1277, %v1279
    %v1281 = vrot.slane %v1267, %v1280
    %v1282 = vcombine.low %v1226, %v1242
    %v1283 = vcombine.high %v1226, %v1242
    %v1285 = vunpack.c.l.s4 1934713408
    %v1286 = vunpack.c.0.s8 %v1285
    %v1287 = vlaneseq
    %v1288 = vshrl.u32 %v1287, 7
    %v1289 = vsub.s32 %v1286, %v1288
    %v1290 = vrot.slane %v1282, %v1289
    %v1292 = vunpack.c.l.s4 1934713408
    %v1293 = vunpack.c.0.s8 %v1292
    %v1294 = vlaneseq
    %v1295 = vshrl.u32 %v1294, 7
    %v1296 = vsub.s32 %v1293, %v1295
    %v1297 = vrot.slane %v1283, %v1296
    %v1298 = vcombine.low %v1233, %v1249
    %v1299 = vcombine.high %v1233, %v1249
    %v1301 = vunpack.c.l.s4 1934713408
    %v1302 = vunpack.c.0.s8 %v1301
    %v1303 = vlaneseq
    %v1304 = vshrl.u32 %v1303, 7
    %v1305 = vsub.s32 %v1302, %v1304
    %v1306 = vrot.slane %v1298, %v1305
    %v1308 = vunpack.c.l.s4 1934713408
    %v1309 = vunpack.c.0.s8 %v1308
    %v1310 = vlaneseq
    %v1311 = vshrl.u32 %v1310, 7
    %v1312 = vsub.s32 %v1309, %v1311
    %v1313 = vrot.slane %v1299, %v1312
    %v1314 = vcombine.low %v1258, %v1274
    %v1315 = vcombine.high %v1258, %v1274
    %v1317 = vunpack.c.l.s4 1934713408
    %v1318 = vunpack.c.0.s8 %v1317
    %v1319 = vlaneseq
    %v1320 = vshrl.u32 %v1319, 7
    %v1321 = vsub.s32 %v1318, %v1320
    %v1322 = vrot.slane %v1314, %v1321
    %v1324 = vunpack.c.l.s4 1934713408
    %v1325 = vunpack.c.0.s8 %v1324
    %v1326 = vlaneseq
    %v1327 = vshrl.u32 %v1326, 7
    %v1328 = vsub.s32 %v1325, %v1327
    %v1329 = vrot.slane %v1315, %v1328
    %v1330 = vcombine.low %v1265, %v1281
    %v1331 = vcombine.high %v1265, %v1281
    %v1333 = vunpack.c.l.s4 1934713408
    %v1334 = vunpack.c.0.s8 %v1333
    %v1335 = vlaneseq
    %v1336 = vshrl.u32 %v1335, 7
    %v1337 = vsub.s32 %v1334, %v1336
    %v1338 = vrot.slane %v1330, %v1337
    %v1340 = vunpack.c.l.s4 1934713408
    %v1341 = vunpack.c.0.s8 %v1340
    %v1342 = vlaneseq
    %v1343 = vshrl.u32 %v1342, 7
    %v1344 = vsub.s32 %v1341, %v1343
    %v1345 = vrot.slane %v1331, %v1344
    %v1346 = vcombine.low %v1290, %v1322
    %v1347 = vcombine.high %v1290, %v1322
    %v1348 = vcombine.low %v1297, %v1329
    %v1349 = vcombine.high %v1297, %v1329
    %v1350 = vcombine.low %v1306, %v1338
    %v1351 = vcombine.high %v1306, %v1338
    %v1352 = vcombine.low %v1313, %v1345
    %v1353 = vcombine.high %v1313, %v1345
    %v1354 = vcombine.low %v348, %v356
    %v1355 = vcombine.high %v348, %v356
    %v1357 = vunpack.c.l.s4 1983009808
    %v1358 = vunpack.c.0.s8 %v1357
    %v1359 = vlaneseq
    %v1360 = vshrl.u32 %v1359, 7
    %v1361 = vsub.s32 %v1358, %v1360
    %v1362 = vrot.slane %v1354, %v1361
    %v1364 = vunpack.c.l.s4 1983009808
    %v1365 = vunpack.c.0.s8 %v1364
    %v1366 = vlaneseq
    %v1367 = vshrl.u32 %v1366, 7
    %v1368 = vsub.s32 %v1365, %v1367
    %v1369 = vrot.slane %v1355, %v1368
    %v1370 = vcombine.low %v352, %v360
    %v1371 = vcombine.high %v352, %v360
    %v1373 = vunpack.c.l.s4 1983009808
    %v1374 = vunpack.c.0.s8 %v1373
    %v1375 = vlaneseq
    %v1376 = vshrl.u32 %v1375, 7
    %v1377 = vsub.s32 %v1374, %v1376
    %v1378 = vrot.slane %v1370, %v1377
    %v1380 = vunpack.c.l.s4 1983009808
    %v1381 = vunpack.c.0.s8 %v1380
    %v1382 = vlaneseq
    %v1383 = vshrl.u32 %v1382, 7
    %v1384 = vsub.s32 %v1381, %v1383
    %v1385 = vrot.slane %v1371, %v1384
    %v1386 = vcombine.low %v372, %v380
    %v1387 = vcombine.high %v372, %v380
    %v1389 = vunpack.c.l.s4 1983009808
    %v1390 = vunpack.c.0.s8 %v1389
    %v1391 = vlaneseq
    %v1392 = vshrl.u32 %v1391, 7
    %v1393 = vsub.s32 %v1390, %v1392
    %v1394 = vrot.slane %v1386, %v1393
    %v1396 = vunpack.c.l.s4 1983009808
    %v1397 = vunpack.c.0.s8 %v1396
    %v1398 = vlaneseq
    %v1399 = vshrl.u32 %v1398, 7
    %v1400 = vsub.s32 %v1397, %v1399
    %v1401 = vrot.slane %v1387, %v1400
    %v1402 = vcombine.low %v376, %v384
    %v1403 = vcombine.high %v376, %v384
    %v1405 = vunpack.c.l.s4 1983009808
    %v1406 = vunpack.c.0.s8 %v1405
    %v1407 = vlaneseq
    %v1408 = vshrl.u32 %v1407, 7
    %v1409 = vsub.s32 %v1406, %v1408
    %v1410 = vrot.slane %v1402, %v1409
    %v1412 = vunpack.c.l.s4 1983009808
    %v1413 = vunpack.c.0.s8 %v1412
    %v1414 = vlaneseq
    %v1415 = vshrl.u32 %v1414, 7
    %v1416 = vsub.s32 %v1413, %v1415
    %v1417 = vrot.slane %v1403, %v1416
    %v1418 = vcombine.low %v1362, %v1378
    %v1419 = vcombine.high %v1362, %v1378
    %v1421 = vunpack.c.l.s4 1934713408
    %v1422 = vunpack.c.0.s8 %v1421
    %v1423 = vlaneseq
    %v1424 = vshrl.u32 %v1423, 7
    %v1425 = vsub.s32 %v1422, %v1424
    %v1426 = vrot.slane %v1418, %v1425
    %v1428 = vunpack.c.l.s4 1934713408
    %v1429 = vunpack.c.0.s8 %v1428
    %v1430 = vlaneseq
    %v1431 = vshrl.u32 %v1430, 7
    %v1432 = vsub.s32 %v1429, %v1431
    %v1433 = vrot.slane %v1419, %v1432
    %v1434 = vcombine.low %v1369, %v1385
    %v1435 = vcombine.high %v1369, %v1385
    %v1437 = vunpack.c.l.s4 1934713408
    %v1438 = vunpack.c.0.s8 %v1437
    %v1439 = vlaneseq
    %v1440 = vshrl.u32 %v1439, 7
    %v1441 = vsub.s32 %v1438, %v1440
    %v1442 = vrot.slane %v1434, %v1441
    %v1444 = vunpack.c.l.s4 1934713408
    %v1445 = vunpack.c.0.s8 %v1444
    %v1446 = vlaneseq
    %v1447 = vshrl.u32 %v1446, 7
    %v1448 = vsub.s32 %v1445, %v1447
    %v1449 = vrot.slane %v1435, %v1448
    %v1450 = vcombine.low %v1394, %v1410
    %v1451 = vcombine.high %v1394, %v1410
    %v1453 = vunpack.c.l.s4 1934713408
    %v1454 = vunpack.c.0.s8 %v1453
    %v1455 = vlaneseq
    %v1456 = vshrl.u32 %v1455, 7
    %v1457 = vsub.s32 %v1454, %v1456
    %v1458 = vrot.slane %v1450, %v1457
    %v1460 = vunpack.c.l.s4 1934713408
    %v1461 = vunpack.c.0.s8 %v1460
    %v1462 = vlaneseq
    %v1463 = vshrl.u32 %v1462, 7
    %v1464 = vsub.s32 %v1461, %v1463
    %v1465 = vrot.slane %v1451, %v1464
    %v1466 = vcombine.low %v1401, %v1417
    %v1467 = vcombine.high %v1401, %v1417
    %v1469 = vunpack.c.l.s4 1934713408
    %v1470 = vunpack.c.0.s8 %v1469
    %v1471 = vlaneseq
    %v1472 = vshrl.u32 %v1471, 7
    %v1473 = vsub.s32 %v1470, %v1472
    %v1474 = vrot.slane %v1466, %v1473
    %v1476 = vunpack.c.l.s4 1934713408
    %v1477 = vunpack.c.0.s8 %v1476
    %v1478 = vlaneseq
    %v1479 = vshrl.u32 %v1478, 7
    %v1480 = vsub.s32 %v1477, %v1479
    %v1481 = vrot.slane %v1467, %v1480
    %v1482 = vcombine.low %v1426, %v1458
    %v1483 = vcombine.high %v1426, %v1458
    %v1484 = vcombine.low %v1433, %v1465
    %v1485 = vcombine.high %v1433, %v1465
    %v1486 = vcombine.low %v1442, %v1474
    %v1487 = vcombine.high %v1442, %v1474
    %v1488 = vcombine.low %v1449, %v1481
    %v1489 = vcombine.high %v1449, %v1481
    %v1490 = vcombine.low %v398, %v408
    %v1491 = vcombine.high %v398, %v408
    %v1493 = vunpack.c.l.s4 1983009808
    %v1494 = vunpack.c.0.s8 %v1493
    %v1495 = vlaneseq
    %v1496 = vshrl.u32 %v1495, 7
    %v1497 = vsub.s32 %v1494, %v1496
    %v1498 = vrot.slane %v1490, %v1497
    %v1500 = vunpack.c.l.s4 1983009808
    %v1501 = vunpack.c.0.s8 %v1500
    %v1502 = vlaneseq
    %v1503 = vshrl.u32 %v1502, 7
    %v1504 = vsub.s32 %v1501, %v1503
    %v1505 = vrot.slane %v1491, %v1504
    %v1506 = vcombine.low %v403, %v413
    %v1507 = vcombine.high %v403, %v413
    %v1509 = vunpack.c.l.s4 1983009808
    %v1510 = vunpack.c.0.s8 %v1509
    %v1511 = vlaneseq
    %v1512 = vshrl.u32 %v1511, 7
    %v1513 = vsub.s32 %v1510, %v1512
    %v1514 = vrot.slane %v1506, %v1513
    %v1516 = vunpack.c.l.s4 1983009808
    %v1517 = vunpack.c.0.s8 %v1516
    %v1518 = vlaneseq
    %v1519 = vshrl.u32 %v1518, 7
    %v1520 = vsub.s32 %v1517, %v1519
    %v1521 = vrot.slane %v1507, %v1520
    %v1522 = vcombine.low %v425, %v433
    %v1523 = vcombine.high %v425, %v433
    %v1525 = vunpack.c.l.s4 1983009808
    %v1526 = vunpack.c.0.s8 %v1525
    %v1527 = vlaneseq
    %v1528 = vshrl.u32 %v1527, 7
    %v1529 = vsub.s32 %v1526, %v1528
    %v1530 = vrot.slane %v1522, %v1529
    %v1532 = vunpack.c.l.s4 1983009808
    %v1533 = vunpack.c.0.s8 %v1532
    %v1534 = vlaneseq
    %v1535 = vshrl.u32 %v1534, 7
    %v1536 = vsub.s32 %v1533, %v1535
    %v1537 = vrot.slane %v1523, %v1536
    %v1538 = vcombine.low %v429, %v437
    %v1539 = vcombine.high %v429, %v437
    %v1541 = vunpack.c.l.s4 1983009808
    %v1542 = vunpack.c.0.s8 %v1541
    %v1543 = vlaneseq
    %v1544 = vshrl.u32 %v1543, 7
    %v1545 = vsub.s32 %v1542, %v1544
    %v1546 = vrot.slane %v1538, %v1545
    %v1548 = vunpack.c.l.s4 1983009808
    %v1549 = vunpack.c.0.s8 %v1548
    %v1550 = vlaneseq
    %v1551 = vshrl.u32 %v1550, 7
    %v1552 = vsub.s32 %v1549, %v1551
    %v1553 = vrot.slane %v1539, %v1552
    %v1554 = vcombine.low %v1498, %v1514
    %v1555 = vcombine.high %v1498, %v1514
    %v1557 = vunpack.c.l.s4 1934713408
    %v1558 = vunpack.c.0.s8 %v1557
    %v1559 = vlaneseq
    %v1560 = vshrl.u32 %v1559, 7
    %v1561 = vsub.s32 %v1558, %v1560
    %v1562 = vrot.slane %v1554, %v1561
    %v1564 = vunpack.c.l.s4 1934713408
    %v1565 = vunpack.c.0.s8 %v1564
    %v1566 = vlaneseq
    %v1567 = vshrl.u32 %v1566, 7
    %v1568 = vsub.s32 %v1565, %v1567
    %v1569 = vrot.slane %v1555, %v1568
    %v1570 = vcombine.low %v1505, %v1521
    %v1571 = vcombine.high %v1505, %v1521
    %v1573 = vunpack.c.l.s4 1934713408
    %v1574 = vunpack.c.0.s8 %v1573
    %v1575 = vlaneseq
    %v1576 = vshrl.u32 %v1575, 7
    %v1577 = vsub.s32 %v1574, %v1576
    %v1578 = vrot.slane %v1570, %v1577
    %v1580 = vunpack.c.l.s4 1934713408
    %v1581 = vunpack.c.0.s8 %v1580
    %v1582 = vlaneseq
    %v1583 = vshrl.u32 %v1582, 7
    %v1584 = vsub.s32 %v1581, %v1583
    %v1585 = vrot.slane %v1571, %v1584
    %v1586 = vcombine.low %v1530, %v1546
    %v1587 = vcombine.high %v1530, %v1546
    %v1589 = vunpack.c.l.s4 1934713408
    %v1590 = vunpack.c.0.s8 %v1589
    %v1591 = vlaneseq
    %v1592 = vshrl.u32 %v1591, 7
    %v1593 = vsub.s32 %v1590, %v1592
    %v1594 = vrot.slane %v1586, %v1593
    %v1596 = vunpack.c.l.s4 1934713408
    %v1597 = vunpack.c.0.s8 %v1596
    %v1598 = vlaneseq
    %v1599 = vshrl.u32 %v1598, 7
    %v1600 = vsub.s32 %v1597, %v1599
    %v1601 = vrot.slane %v1587, %v1600
    %v1602 = vcombine.low %v1537, %v1553
    %v1603 = vcombine.high %v1537, %v1553
    %v1605 = vunpack.c.l.s4 1934713408
    %v1606 = vunpack.c.0.s8 %v1605
    %v1607 = vlaneseq
    %v1608 = vshrl.u32 %v1607, 7
    %v1609 = vsub.s32 %v1606, %v1608
    %v1610 = vrot.slane %v1602, %v1609
    %v1612 = vunpack.c.l.s4 1934713408
    %v1613 = vunpack.c.0.s8 %v1612
    %v1614 = vlaneseq
    %v1615 = vshrl.u32 %v1614, 7
    %v1616 = vsub.s32 %v1613, %v1615
    %v1617 = vrot.slane %v1603, %v1616
    %v1618 = vcombine.low %v1562, %v1594
    %v1619 = vcombine.high %v1562, %v1594
    %v1620 = vcombine.low %v1569, %v1601
    %v1621 = vcombine.high %v1569, %v1601
    %v1622 = vcombine.low %v1578, %v1610
    %v1623 = vcombine.high %v1578, %v1610
    %v1624 = vcombine.low %v1585, %v1617
    %v1625 = vcombine.high %v1585, %v1617
    %v1626 = vcombine.low %v449, %v457
    %v1627 = vcombine.high %v449, %v457
    %v1629 = vunpack.c.l.s4 1983009808
    %v1630 = vunpack.c.0.s8 %v1629
    %v1631 = vlaneseq
    %v1632 = vshrl.u32 %v1631, 7
    %v1633 = vsub.s32 %v1630, %v1632
    %v1634 = vrot.slane %v1626, %v1633
    %v1636 = vunpack.c.l.s4 1983009808
    %v1637 = vunpack.c.0.s8 %v1636
    %v1638 = vlaneseq
    %v1639 = vshrl.u32 %v1638, 7
    %v1640 = vsub.s32 %v1637, %v1639
    %v1641 = vrot.slane %v1627, %v1640
    %v1642 = vcombine.low %v453, %v461
    %v1643 = vcombine.high %v453, %v461
    %v1645 = vunpack.c.l.s4 1983009808
    %v1646 = vunpack.c.0.s8 %v1645
    %v1647 = vlaneseq
    %v1648 = vshrl.u32 %v1647, 7
    %v1649 = vsub.s32 %v1646, %v1648
    %v1650 = vrot.slane %v1642, %v1649
    %v1652 = vunpack.c.l.s4 1983009808
    %v1653 = vunpack.c.0.s8 %v1652
    %v1654 = vlaneseq
    %v1655 = vshrl.u32 %v1654, 7
    %v1656 = vsub.s32 %v1653, %v1655
    %v1657 = vrot.slane %v1643, %v1656
    %v1658 = vcombine.low %v1634, %v1650
    %v1659 = vcombine.high %v1634, %v1650
    %v1661 = vunpack.c.l.s4 1934713408
    %v1662 = vunpack.c.0.s8 %v1661
    %v1663 = vlaneseq
    %v1664 = vshrl.u32 %v1663, 7
    %v1665 = vsub.s32 %v1662, %v1664
    %v1666 = vrot.slane %v1658, %v1665
    %v1668 = vunpack.c.l.s4 1934713408
    %v1669 = vunpack.c.0.s8 %v1668
    %v1670 = vlaneseq
    %v1671 = vshrl.u32 %v1670, 7
    %v1672 = vsub.s32 %v1669, %v1671
    %v1673 = vrot.slane %v1659, %v1672
    %v1674 = vcombine.low %v1641, %v1657
    %v1675 = vcombine.high %v1641, %v1657
    %v1677 = vunpack.c.l.s4 1934713408
    %v1678 = vunpack.c.0.s8 %v1677
    %v1679 = vlaneseq
    %v1680 = vshrl.u32 %v1679, 7
    %v1681 = vsub.s32 %v1678, %v1680
    %v1682 = vrot.slane %v1674, %v1681
    %v1684 = vunpack.c.l.s4 1934713408
    %v1685 = vunpack.c.0.s8 %v1684
    %v1686 = vlaneseq
    %v1687 = vshrl.u32 %v1686, 7
    %v1688 = vsub.s32 %v1685, %v1687
    %v1689 = vrot.slane %v1675, %v1688
    %v1690 = vcombine.high %v1666, 0.0
    %v1691 = vcombine.high %v1673, 0.0
    %v1692 = vcombine.high %v1682, 0.0
    %v1693 = vcombine.high %v1689, 0.0
    %1699 = vrot.lane.b32.xlu0 %v599, 16
    %v1700 = vpop.permute.xlu0 %1699
    %1701 = vrot.lane.b32.xlu0 %v735, 16
    %v1702 = vpop.permute.xlu0 %1701
    %1703 = vrot.lane.b32.xlu0 %v871, 16
    %v1704 = vpop.permute.xlu0 %1703
    %1705 = vrot.lane.b32.xlu0 %v1007, 16
    %v1706 = vpop.permute.xlu0 %1705
    %1707 = vrot.lane.b32.xlu0 %v1078, 16
    %v1708 = vpop.permute.xlu0 %1707
    %1719 = vrot.lane.b32.xlu0 %v600, 32
    %v1720 = vpop.permute.xlu0 %1719
    %1721 = vrot.lane.b32.xlu0 %v736, 32
    %v1722 = vpop.permute.xlu0 %1721
    %1723 = vrot.lane.b32.xlu0 %v872, 32
    %v1724 = vpop.permute.xlu0 %1723
    %1725 = vrot.lane.b32.xlu0 %v1008, 32
    %v1726 = vpop.permute.xlu0 %1725
    %1727 = vrot.lane.b32.xlu0 %v1061, 32
    %v1728 = vpop.permute.xlu0 %1727
    %1739 = vrot.lane.b32.xlu0 %v601, 48
    %v1740 = vpop.permute.xlu0 %1739
    %1741 = vrot.lane.b32.xlu0 %v737, 48
    %v1742 = vpop.permute.xlu0 %1741
    %1743 = vrot.lane.b32.xlu0 %v873, 48
    %v1744 = vpop.permute.xlu0 %1743
    %1745 = vrot.lane.b32.xlu0 %v1009, 48
    %v1746 = vpop.permute.xlu0 %1745
    %1747 = vrot.lane.b32.xlu0 %v1079, 48
    %v1748 = vpop.permute.xlu0 %1747
    %1759 = vrot.lane.b32.xlu0 %v602, 64
    %v1760 = vpop.permute.xlu0 %1759
    %1761 = vrot.lane.b32.xlu0 %v738, 64
    %v1762 = vpop.permute.xlu0 %1761
    %1763 = vrot.lane.b32.xlu0 %v874, 64
    %v1764 = vpop.permute.xlu0 %1763
    %1765 = vrot.lane.b32.xlu0 %v1010, 64
    %v1766 = vpop.permute.xlu0 %1765
    %1767 = vrot.lane.b32.xlu0 %v1070, 64
    %v1768 = vpop.permute.xlu0 %1767
    %1779 = vrot.lane.b32.xlu0 %v603, 80
    %v1780 = vpop.permute.xlu0 %1779
    %1781 = vrot.lane.b32.xlu0 %v739, 80
    %v1782 = vpop.permute.xlu0 %1781
    %1783 = vrot.lane.b32.xlu0 %v875, 80
    %v1784 = vpop.permute.xlu0 %1783
    %1785 = vrot.lane.b32.xlu0 %v1011, 80
    %v1786 = vpop.permute.xlu0 %1785
    %1787 = vrot.lane.b32.xlu0 %v1080, 80
    %v1788 = vpop.permute.xlu0 %1787
    %1799 = vrot.lane.b32.xlu0 %v604, 96
    %v1800 = vpop.permute.xlu0 %1799
    %1801 = vrot.lane.b32.xlu0 %v740, 96
    %v1802 = vpop.permute.xlu0 %1801
    %1803 = vrot.lane.b32.xlu0 %v876, 96
    %v1804 = vpop.permute.xlu0 %1803
    %1805 = vrot.lane.b32.xlu0 %v1012, 96
    %v1806 = vpop.permute.xlu0 %1805
    %1807 = vrot.lane.b32.xlu0 %v1077, 96
    %v1808 = vpop.permute.xlu0 %1807
    %1819 = vrot.lane.b32.xlu0 %v605, 112
    %v1820 = vpop.permute.xlu0 %1819
    %1821 = vrot.lane.b32.xlu0 %v741, 112
    %v1822 = vpop.permute.xlu0 %1821
    %1823 = vrot.lane.b32.xlu0 %v877, 112
    %v1824 = vpop.permute.xlu0 %1823
    %1825 = vrot.lane.b32.xlu0 %v1013, 112
    %v1826 = vpop.permute.xlu0 %1825
    %1827 = vrot.lane.b32.xlu0 %v1081, 112
    %v1828 = vpop.permute.xlu0 %1827
    %1839 = vrot.lane.b32.xlu0 %v1211, 16
    %v1840 = vpop.permute.xlu0 %1839
    %1841 = vrot.lane.b32.xlu0 %v1347, 16
    %v1842 = vpop.permute.xlu0 %1841
    %1843 = vrot.lane.b32.xlu0 %v1483, 16
    %v1844 = vpop.permute.xlu0 %1843
    %1845 = vrot.lane.b32.xlu0 %v1619, 16
    %v1846 = vpop.permute.xlu0 %1845
    %1847 = vrot.lane.b32.xlu0 %v1690, 16
    %v1848 = vpop.permute.xlu0 %1847
    %1859 = vrot.lane.b32.xlu0 %v1212, 32
    %v1860 = vpop.permute.xlu0 %1859
    %1861 = vrot.lane.b32.xlu0 %v1348, 32
    %v1862 = vpop.permute.xlu0 %1861
    %1863 = vrot.lane.b32.xlu0 %v1484, 32
    %v1864 = vpop.permute.xlu0 %1863
    %1865 = vrot.lane.b32.xlu0 %v1620, 32
    %v1866 = vpop.permute.xlu0 %1865
    %1867 = vrot.lane.b32.xlu0 %v1673, 32
    %v1868 = vpop.permute.xlu0 %1867
    %1879 = vrot.lane.b32.xlu0 %v1213, 48
    %v1880 = vpop.permute.xlu0 %1879
    %1881 = vrot.lane.b32.xlu0 %v1349, 48
    %v1882 = vpop.permute.xlu0 %1881
    %1883 = vrot.lane.b32.xlu0 %v1485, 48
    %v1884 = vpop.permute.xlu0 %1883
    %1885 = vrot.lane.b32.xlu0 %v1621, 48
    %v1886 = vpop.permute.xlu0 %1885
    %1887 = vrot.lane.b32.xlu0 %v1691, 48
    %v1888 = vpop.permute.xlu0 %1887
    %1899 = vrot.lane.b32.xlu0 %v1214, 64
    %v1900 = vpop.permute.xlu0 %1899
    %1901 = vrot.lane.b32.xlu0 %v1350, 64
    %v1902 = vpop.permute.xlu0 %1901
    %1903 = vrot.lane.b32.xlu0 %v1486, 64
    %v1904 = vpop.permute.xlu0 %1903
    %1905 = vrot.lane.b32.xlu0 %v1622, 64
    %v1906 = vpop.permute.xlu0 %1905
    %1907 = vrot.lane.b32.xlu0 %v1682, 64
    %v1908 = vpop.permute.xlu0 %1907
    %1919 = vrot.lane.b32.xlu0 %v1215, 80
    %v1920 = vpop.permute.xlu0 %1919
    %1921 = vrot.lane.b32.xlu0 %v1351, 80
    %v1922 = vpop.permute.xlu0 %1921
    %1923 = vrot.lane.b32.xlu0 %v1487, 80
    %v1924 = vpop.permute.xlu0 %1923
    %1925 = vrot.lane.b32.xlu0 %v1623, 80
    %v1926 = vpop.permute.xlu0 %1925
    %1927 = vrot.lane.b32.xlu0 %v1692, 80
    %v1928 = vpop.permute.xlu0 %1927
    %1939 = vrot.lane.b32.xlu0 %v1216, 96
    %v1940 = vpop.permute.xlu0 %1939
    %1941 = vrot.lane.b32.xlu0 %v1352, 96
    %v1942 = vpop.permute.xlu0 %1941
    %1943 = vrot.lane.b32.xlu0 %v1488, 96
    %v1944 = vpop.permute.xlu0 %1943
    %1945 = vrot.lane.b32.xlu0 %v1624, 96
    %v1946 = vpop.permute.xlu0 %1945
    %1947 = vrot.lane.b32.xlu0 %v1689, 96
    %v1948 = vpop.permute.xlu0 %1947
    %1959 = vrot.lane.b32.xlu0 %v1217, 112
    %v1960 = vpop.permute.xlu0 %1959
    %1961 = vrot.lane.b32.xlu0 %v1353, 112
    %v1962 = vpop.permute.xlu0 %1961
    %1963 = vrot.lane.b32.xlu0 %v1489, 112
    %v1964 = vpop.permute.xlu0 %1963
    %1965 = vrot.lane.b32.xlu0 %v1625, 112
    %v1966 = vpop.permute.xlu0 %1965
    %1967 = vrot.lane.b32.xlu0 %v1693, 112
    %v1968 = vpop.permute.xlu0 %1967
    %vm1974 = vcmask 130048
    %v1975 = vsel %vm1974, %v598, %v1700
    %v1976 = vsel %vm1974, %v734, %v1702
    %v1977 = vsel %vm1974, %v870, %v1704
    %v1978 = vsel %vm1974, %v1006, %v1706
    %v1979 = vsel %vm1974, %v1054, %v1708
    %vm1980 = vcmask 261120
    %v1981 = vsel %vm1980, %v1975, %v1720
    %v1982 = vsel %vm1980, %v1976, %v1722
    %v1983 = vsel %vm1980, %v1977, %v1724
    %v1984 = vsel %vm1980, %v1978, %v1726
    %v1985 = vsel %vm1980, %v1979, %v1728
    %vm1986 = vcmask 392192
    %v1987 = vsel %vm1986, %v1981, %v1740
    %v1988 = vsel %vm1986, %v1982, %v1742
    %v1989 = vsel %vm1986, %v1983, %v1744
    %v1990 = vsel %vm1986, %v1984, %v1746
    %v1991 = vsel %vm1986, %v1985, %v1748
    %vm1992 = vcmask 523264
    %v1993 = vsel %vm1992, %v1987, %v1760
    %v1994 = vsel %vm1992, %v1988, %v1762
    %v1995 = vsel %vm1992, %v1989, %v1764
    %v1996 = vsel %vm1992, %v1990, %v1766
    %v1997 = vsel %vm1992, %v1991, %v1768
    %vm1998 = vcmask 654336
    %v1999 = vsel %vm1998, %v1993, %v1780
    %v2000 = vsel %vm1998, %v1994, %v1782
    %v2001 = vsel %vm1998, %v1995, %v1784
    %v2002 = vsel %vm1998, %v1996, %v1786
    %v2003 = vsel %vm1998, %v1997, %v1788
    %vm2004 = vcmask 785408
    %v2005 = vsel %vm2004, %v1999, %v1800
    %v2006 = vsel %vm2004, %v2000, %v1802
    %v2007 = vsel %vm2004, %v2001, %v1804
    %v2008 = vsel %vm2004, %v2002, %v1806
    %v2009 = vsel %vm2004, %v2003, %v1808
    %vm2010 = vcmask 916480
    %v2011 = vsel %vm2010, %v2005, %v1820
    %v2012 = vsel %vm2010, %v2006, %v1822
    %v2013 = vsel %vm2010, %v2007, %v1824
    %v2014 = vsel %vm2010, %v2008, %v1826
    %v2015 = vsel %vm2010, %v2009, %v1828
    %v2016 = vsel %vm1974, %v1210, %v1840
    %v2017 = vsel %vm1974, %v1346, %v1842
    %v2018 = vsel %vm1974, %v1482, %v1844
    %v2019 = vsel %vm1974, %v1618, %v1846
    %v2020 = vsel %vm1974, %v1666, %v1848
    %v2021 = vsel %vm1980, %v2016, %v1860
    %v2022 = vsel %vm1980, %v2017, %v1862
    %v2023 = vsel %vm1980, %v2018, %v1864
    %v2024 = vsel %vm1980, %v2019, %v1866
    %v2025 = vsel %vm1980, %v2020, %v1868
    %v2026 = vsel %vm1986, %v2021, %v1880
    %v2027 = vsel %vm1986, %v2022, %v1882
    %v2028 = vsel %vm1986, %v2023, %v1884
    %v2029 = vsel %vm1986, %v2024, %v1886
    %v2030 = vsel %vm1986, %v2025, %v1888
    %v2031 = vsel %vm1992, %v2026, %v1900
    %v2032 = vsel %vm1992, %v2027, %v1902
    %v2033 = vsel %vm1992, %v2028, %v1904
    %v2034 = vsel %vm1992, %v2029, %v1906
    %v2035 = vsel %vm1992, %v2030, %v1908
    %v2036 = vsel %vm1998, %v2031, %v1920
    %v2037 = vsel %vm1998, %v2032, %v1922
    %v2038 = vsel %vm1998, %v2033, %v1924
    %v2039 = vsel %vm1998, %v2034, %v1926
    %v2040 = vsel %vm1998, %v2035, %v1928
    %v2041 = vsel %vm2004, %v2036, %v1940
    %v2042 = vsel %vm2004, %v2037, %v1942
    %v2043 = vsel %vm2004, %v2038, %v1944
    %v2044 = vsel %vm2004, %v2039, %v1946
    %v2045 = vsel %vm2004, %v2040, %v1948
    %v2046 = vsel %vm2010, %v2041, %v1960
    %v2047 = vsel %vm2010, %v2042, %v1962
    %v2048 = vsel %vm2010, %v2043, %v1964
    %v2049 = vsel %vm2010, %v2044, %v1966
    %v2050 = vsel %vm2010, %v2045, %v1968
    %2059 = vrot.lane.b32.xlu0 %v244, 126
    %v2060 = vpop.permute.xlu0 %2059
    %2061 = vrot.lane.b32.xlu0 %v245, 126
    %v2062 = vpop.permute.xlu0 %2061
    %2063 = vrot.lane.b32.xlu0 %v247, 126
    %v2064 = vpop.permute.xlu0 %2063
    %2065 = vrot.lane.b32.xlu0 %v248, 126
    %v2066 = vpop.permute.xlu0 %2065
    %2067 = vrot.lane.b32.xlu0 %v250, 126
    %v2068 = vpop.permute.xlu0 %2067
    %2069 = vrot.lane.b32.xlu0 %v251, 126
    %v2070 = vpop.permute.xlu0 %2069
    %2071 = vrot.lane.b32.xlu0 %v253, 126
    %v2072 = vpop.permute.xlu0 %2071
    %2073 = vrot.lane.b32.xlu0 %v254, 126
    %v2074 = vpop.permute.xlu0 %2073
    %2083 = vrot.lane.b32.xlu0 %v244, 124
    %v2084 = vpop.permute.xlu0 %2083
    %2085 = vrot.lane.b32.xlu0 %v245, 124
    %v2086 = vpop.permute.xlu0 %2085
    %2087 = vrot.lane.b32.xlu0 %v247, 124
    %v2088 = vpop.permute.xlu0 %2087
    %2089 = vrot.lane.b32.xlu0 %v248, 124
    %v2090 = vpop.permute.xlu0 %2089
    %2091 = vrot.lane.b32.xlu0 %v250, 124
    %v2092 = vpop.permute.xlu0 %2091
    %2093 = vrot.lane.b32.xlu0 %v251, 124
    %v2094 = vpop.permute.xlu0 %2093
    %2095 = vrot.lane.b32.xlu0 %v253, 124
    %v2096 = vpop.permute.xlu0 %2095
    %2097 = vrot.lane.b32.xlu0 %v254, 124
    %v2098 = vpop.permute.xlu0 %2097
    %v2111 = vrot.slane %v244, 2
    %v2112 = vrot.slane %v245, 2
    %v2113 = vsel %vm316, %v2111, %v2112
    %v2114 = vrot.slane %v246, 2
    %v2115 = vsel %vm316, %v2112, %v2114
    %v2116 = vrot.slane %v247, 2
    %v2117 = vrot.slane %v248, 2
    %v2118 = vsel %vm316, %v2116, %v2117
    %v2119 = vrot.slane %v249, 2
    %v2120 = vsel %vm316, %v2117, %v2119
    %v2121 = vrot.slane %v250, 2
    %v2122 = vrot.slane %v251, 2
    %v2123 = vsel %vm316, %v2121, %v2122
    %v2124 = vrot.slane %v252, 2
    %v2125 = vsel %vm316, %v2122, %v2124
    %v2126 = vrot.slane %v253, 2
    %v2127 = vrot.slane %v254, 2
    %v2128 = vsel %vm316, %v2126, %v2127
    %v2129 = vrot.slane %v255, 2
    %v2130 = vsel %vm316, %v2127, %v2129
    %2139 = vrot.lane.b32.xlu0 %v2113, 126
    %v2140 = vpop.permute.xlu0 %2139
    %2141 = vrot.lane.b32.xlu0 %v2115, 126
    %v2142 = vpop.permute.xlu0 %2141
    %2143 = vrot.lane.b32.xlu0 %v2118, 126
    %v2144 = vpop.permute.xlu0 %2143
    %2145 = vrot.lane.b32.xlu0 %v2120, 126
    %v2146 = vpop.permute.xlu0 %2145
    %2147 = vrot.lane.b32.xlu0 %v2123, 126
    %v2148 = vpop.permute.xlu0 %2147
    %2149 = vrot.lane.b32.xlu0 %v2125, 126
    %v2150 = vpop.permute.xlu0 %2149
    %2151 = vrot.lane.b32.xlu0 %v2128, 126
    %v2152 = vpop.permute.xlu0 %2151
    %2153 = vrot.lane.b32.xlu0 %v2130, 126
    %v2154 = vpop.permute.xlu0 %2153
    %2163 = vrot.lane.b32.xlu0 %v2113, 124
    %v2164 = vpop.permute.xlu0 %2163
    %2165 = vrot.lane.b32.xlu0 %v2115, 124
    %v2166 = vpop.permute.xlu0 %2165
    %2167 = vrot.lane.b32.xlu0 %v2118, 124
    %v2168 = vpop.permute.xlu0 %2167
    %2169 = vrot.lane.b32.xlu0 %v2120, 124
    %v2170 = vpop.permute.xlu0 %2169
    %2171 = vrot.lane.b32.xlu0 %v2123, 124
    %v2172 = vpop.permute.xlu0 %2171
    %2173 = vrot.lane.b32.xlu0 %v2125, 124
    %v2174 = vpop.permute.xlu0 %2173
    %2175 = vrot.lane.b32.xlu0 %v2128, 124
    %v2176 = vpop.permute.xlu0 %2175
    %2177 = vrot.lane.b32.xlu0 %v2130, 124
    %v2178 = vpop.permute.xlu0 %2177
    %v2187 = vrot.slane %v244, 4
    %v2188 = vrot.slane %v245, 4
    %v2189 = vsel %vm393, %v2187, %v2188
    %v2190 = vrot.slane %v246, 4
    %v2191 = vsel %vm393, %v2188, %v2190
    %v2192 = vrot.slane %v247, 4
    %v2193 = vrot.slane %v248, 4
    %v2194 = vsel %vm393, %v2192, %v2193
    %v2195 = vrot.slane %v249, 4
    %v2196 = vsel %vm393, %v2193, %v2195
    %v2197 = vrot.slane %v250, 4
    %v2198 = vrot.slane %v251, 4
    %v2199 = vsel %vm393, %v2197, %v2198
    %v2200 = vrot.slane %v252, 4
    %v2201 = vsel %vm393, %v2198, %v2200
    %v2202 = vrot.slane %v253, 4
    %v2203 = vrot.slane %v254, 4
    %v2204 = vsel %vm393, %v2202, %v2203
    %v2205 = vrot.slane %v255, 4
    %v2206 = vsel %vm393, %v2203, %v2205
    %2215 = vrot.lane.b32.xlu0 %v2189, 126
    %v2216 = vpop.permute.xlu0 %2215
    %2217 = vrot.lane.b32.xlu0 %v2191, 126
    %v2218 = vpop.permute.xlu0 %2217
    %2219 = vrot.lane.b32.xlu0 %v2194, 126
    %v2220 = vpop.permute.xlu0 %2219
    %2221 = vrot.lane.b32.xlu0 %v2196, 126
    %v2222 = vpop.permute.xlu0 %2221
    %2223 = vrot.lane.b32.xlu0 %v2199, 126
    %v2224 = vpop.permute.xlu0 %2223
    %2225 = vrot.lane.b32.xlu0 %v2201, 126
    %v2226 = vpop.permute.xlu0 %2225
    %2227 = vrot.lane.b32.xlu0 %v2204, 126
    %v2228 = vpop.permute.xlu0 %2227
    %2229 = vrot.lane.b32.xlu0 %v2206, 126
    %v2230 = vpop.permute.xlu0 %2229
    %2239 = vrot.lane.b32.xlu0 %v2189, 124
    %v2240 = vpop.permute.xlu0 %2239
    %2241 = vrot.lane.b32.xlu0 %v2191, 124
    %v2242 = vpop.permute.xlu0 %2241
    %2243 = vrot.lane.b32.xlu0 %v2194, 124
    %v2244 = vpop.permute.xlu0 %2243
    %2245 = vrot.lane.b32.xlu0 %v2196, 124
    %v2246 = vpop.permute.xlu0 %2245
    %2247 = vrot.lane.b32.xlu0 %v2199, 124
    %v2248 = vpop.permute.xlu0 %2247
    %2249 = vrot.lane.b32.xlu0 %v2201, 124
    %v2250 = vpop.permute.xlu0 %2249
    %2251 = vrot.lane.b32.xlu0 %v2204, 124
    %v2252 = vpop.permute.xlu0 %2251
    %2253 = vrot.lane.b32.xlu0 %v2206, 124
    %v2254 = vpop.permute.xlu0 %2253
    %v2263 = vcombine.low %v244, %v250
    %v2264 = vcombine.high %v244, %v250
    %v2266 = vunpack.c.l.s4 1983009808
    %v2267 = vunpack.c.0.s8 %v2266
    %v2268 = vlaneseq
    %v2269 = vshrl.u32 %v2268, 7
    %v2270 = vsub.s32 %v2267, %v2269
    %v2271 = vrot.slane %v2263, %v2270
    %v2273 = vunpack.c.l.s4 1983009808
    %v2274 = vunpack.c.0.s8 %v2273
    %v2275 = vlaneseq
    %v2276 = vshrl.u32 %v2275, 7
    %v2277 = vsub.s32 %v2274, %v2276
    %v2278 = vrot.slane %v2264, %v2277
    %v2279 = vcombine.low %v247, %v253
    %v2280 = vcombine.high %v247, %v253
    %v2282 = vunpack.c.l.s4 1983009808
    %v2283 = vunpack.c.0.s8 %v2282
    %v2284 = vlaneseq
    %v2285 = vshrl.u32 %v2284, 7
    %v2286 = vsub.s32 %v2283, %v2285
    %v2287 = vrot.slane %v2279, %v2286
    %v2289 = vunpack.c.l.s4 1983009808
    %v2290 = vunpack.c.0.s8 %v2289
    %v2291 = vlaneseq
    %v2292 = vshrl.u32 %v2291, 7
    %v2293 = vsub.s32 %v2290, %v2292
    %v2294 = vrot.slane %v2280, %v2293
    %v2295 = vcombine.low %v2060, %v2068
    %v2296 = vcombine.high %v2060, %v2068
    %v2298 = vunpack.c.l.s4 1983009808
    %v2299 = vunpack.c.0.s8 %v2298
    %v2300 = vlaneseq
    %v2301 = vshrl.u32 %v2300, 7
    %v2302 = vsub.s32 %v2299, %v2301
    %v2303 = vrot.slane %v2295, %v2302
    %v2305 = vunpack.c.l.s4 1983009808
    %v2306 = vunpack.c.0.s8 %v2305
    %v2307 = vlaneseq
    %v2308 = vshrl.u32 %v2307, 7
    %v2309 = vsub.s32 %v2306, %v2308
    %v2310 = vrot.slane %v2296, %v2309
    %v2311 = vcombine.low %v2064, %v2072
    %v2312 = vcombine.high %v2064, %v2072
    %v2314 = vunpack.c.l.s4 1983009808
    %v2315 = vunpack.c.0.s8 %v2314
    %v2316 = vlaneseq
    %v2317 = vshrl.u32 %v2316, 7
    %v2318 = vsub.s32 %v2315, %v2317
    %v2319 = vrot.slane %v2311, %v2318
    %v2321 = vunpack.c.l.s4 1983009808
    %v2322 = vunpack.c.0.s8 %v2321
    %v2323 = vlaneseq
    %v2324 = vshrl.u32 %v2323, 7
    %v2325 = vsub.s32 %v2322, %v2324
    %v2326 = vrot.slane %v2312, %v2325
    %v2327 = vcombine.low %v2271, %v2287
    %v2328 = vcombine.high %v2271, %v2287
    %v2330 = vunpack.c.l.s4 1934713408
    %v2331 = vunpack.c.0.s8 %v2330
    %v2332 = vlaneseq
    %v2333 = vshrl.u32 %v2332, 7
    %v2334 = vsub.s32 %v2331, %v2333
    %v2335 = vrot.slane %v2327, %v2334
    %v2337 = vunpack.c.l.s4 1934713408
    %v2338 = vunpack.c.0.s8 %v2337
    %v2339 = vlaneseq
    %v2340 = vshrl.u32 %v2339, 7
    %v2341 = vsub.s32 %v2338, %v2340
    %v2342 = vrot.slane %v2328, %v2341
    %v2343 = vcombine.low %v2278, %v2294
    %v2344 = vcombine.high %v2278, %v2294
    %v2346 = vunpack.c.l.s4 1934713408
    %v2347 = vunpack.c.0.s8 %v2346
    %v2348 = vlaneseq
    %v2349 = vshrl.u32 %v2348, 7
    %v2350 = vsub.s32 %v2347, %v2349
    %v2351 = vrot.slane %v2343, %v2350
    %v2353 = vunpack.c.l.s4 1934713408
    %v2354 = vunpack.c.0.s8 %v2353
    %v2355 = vlaneseq
    %v2356 = vshrl.u32 %v2355, 7
    %v2357 = vsub.s32 %v2354, %v2356
    %v2358 = vrot.slane %v2344, %v2357
    %v2359 = vcombine.low %v2303, %v2319
    %v2360 = vcombine.high %v2303, %v2319
    %v2362 = vunpack.c.l.s4 1934713408
    %v2363 = vunpack.c.0.s8 %v2362
    %v2364 = vlaneseq
    %v2365 = vshrl.u32 %v2364, 7
    %v2366 = vsub.s32 %v2363, %v2365
    %v2367 = vrot.slane %v2359, %v2366
    %v2369 = vunpack.c.l.s4 1934713408
    %v2370 = vunpack.c.0.s8 %v2369
    %v2371 = vlaneseq
    %v2372 = vshrl.u32 %v2371, 7
    %v2373 = vsub.s32 %v2370, %v2372
    %v2374 = vrot.slane %v2360, %v2373
    %v2375 = vcombine.low %v2310, %v2326
    %v2376 = vcombine.high %v2310, %v2326
    %v2378 = vunpack.c.l.s4 1934713408
    %v2379 = vunpack.c.0.s8 %v2378
    %v2380 = vlaneseq
    %v2381 = vshrl.u32 %v2380, 7
    %v2382 = vsub.s32 %v2379, %v2381
    %v2383 = vrot.slane %v2375, %v2382
    %v2385 = vunpack.c.l.s4 1934713408
    %v2386 = vunpack.c.0.s8 %v2385
    %v2387 = vlaneseq
    %v2388 = vshrl.u32 %v2387, 7
    %v2389 = vsub.s32 %v2386, %v2388
    %v2390 = vrot.slane %v2376, %v2389
    %v2391 = vcombine.low %v2335, %v2367
    %v2392 = vcombine.high %v2335, %v2367
    %v2393 = vcombine.low %v2342, %v2374
    %v2394 = vcombine.high %v2342, %v2374
    %v2395 = vcombine.low %v2351, %v2383
    %v2396 = vcombine.high %v2351, %v2383
    %v2397 = vcombine.low %v2358, %v2390
    %v2398 = vcombine.high %v2358, %v2390
    %v2399 = vcombine.low %v2084, %v2092
    %v2400 = vcombine.high %v2084, %v2092
    %v2402 = vunpack.c.l.s4 1983009808
    %v2403 = vunpack.c.0.s8 %v2402
    %v2404 = vlaneseq
    %v2405 = vshrl.u32 %v2404, 7
    %v2406 = vsub.s32 %v2403, %v2405
    %v2407 = vrot.slane %v2399, %v2406
    %v2409 = vunpack.c.l.s4 1983009808
    %v2410 = vunpack.c.0.s8 %v2409
    %v2411 = vlaneseq
    %v2412 = vshrl.u32 %v2411, 7
    %v2413 = vsub.s32 %v2410, %v2412
    %v2414 = vrot.slane %v2400, %v2413
    %v2415 = vcombine.low %v2088, %v2096
    %v2416 = vcombine.high %v2088, %v2096
    %v2418 = vunpack.c.l.s4 1983009808
    %v2419 = vunpack.c.0.s8 %v2418
    %v2420 = vlaneseq
    %v2421 = vshrl.u32 %v2420, 7
    %v2422 = vsub.s32 %v2419, %v2421
    %v2423 = vrot.slane %v2415, %v2422
    %v2425 = vunpack.c.l.s4 1983009808
    %v2426 = vunpack.c.0.s8 %v2425
    %v2427 = vlaneseq
    %v2428 = vshrl.u32 %v2427, 7
    %v2429 = vsub.s32 %v2426, %v2428
    %v2430 = vrot.slane %v2416, %v2429
    %v2431 = vcombine.low %v2113, %v2123
    %v2432 = vcombine.high %v2113, %v2123
    %v2434 = vunpack.c.l.s4 1983009808
    %v2435 = vunpack.c.0.s8 %v2434
    %v2436 = vlaneseq
    %v2437 = vshrl.u32 %v2436, 7
    %v2438 = vsub.s32 %v2435, %v2437
    %v2439 = vrot.slane %v2431, %v2438
    %v2441 = vunpack.c.l.s4 1983009808
    %v2442 = vunpack.c.0.s8 %v2441
    %v2443 = vlaneseq
    %v2444 = vshrl.u32 %v2443, 7
    %v2445 = vsub.s32 %v2442, %v2444
    %v2446 = vrot.slane %v2432, %v2445
    %v2447 = vcombine.low %v2118, %v2128
    %v2448 = vcombine.high %v2118, %v2128
    %v2450 = vunpack.c.l.s4 1983009808
    %v2451 = vunpack.c.0.s8 %v2450
    %v2452 = vlaneseq
    %v2453 = vshrl.u32 %v2452, 7
    %v2454 = vsub.s32 %v2451, %v2453
    %v2455 = vrot.slane %v2447, %v2454
    %v2457 = vunpack.c.l.s4 1983009808
    %v2458 = vunpack.c.0.s8 %v2457
    %v2459 = vlaneseq
    %v2460 = vshrl.u32 %v2459, 7
    %v2461 = vsub.s32 %v2458, %v2460
    %v2462 = vrot.slane %v2448, %v2461
    %v2463 = vcombine.low %v2407, %v2423
    %v2464 = vcombine.high %v2407, %v2423
    %v2466 = vunpack.c.l.s4 1934713408
    %v2467 = vunpack.c.0.s8 %v2466
    %v2468 = vlaneseq
    %v2469 = vshrl.u32 %v2468, 7
    %v2470 = vsub.s32 %v2467, %v2469
    %v2471 = vrot.slane %v2463, %v2470
    %v2473 = vunpack.c.l.s4 1934713408
    %v2474 = vunpack.c.0.s8 %v2473
    %v2475 = vlaneseq
    %v2476 = vshrl.u32 %v2475, 7
    %v2477 = vsub.s32 %v2474, %v2476
    %v2478 = vrot.slane %v2464, %v2477
    %v2479 = vcombine.low %v2414, %v2430
    %v2480 = vcombine.high %v2414, %v2430
    %v2482 = vunpack.c.l.s4 1934713408
    %v2483 = vunpack.c.0.s8 %v2482
    %v2484 = vlaneseq
    %v2485 = vshrl.u32 %v2484, 7
    %v2486 = vsub.s32 %v2483, %v2485
    %v2487 = vrot.slane %v2479, %v2486
    %v2489 = vunpack.c.l.s4 1934713408
    %v2490 = vunpack.c.0.s8 %v2489
    %v2491 = vlaneseq
    %v2492 = vshrl.u32 %v2491, 7
    %v2493 = vsub.s32 %v2490, %v2492
    %v2494 = vrot.slane %v2480, %v2493
    %v2495 = vcombine.low %v2439, %v2455
    %v2496 = vcombine.high %v2439, %v2455
    %v2498 = vunpack.c.l.s4 1934713408
    %v2499 = vunpack.c.0.s8 %v2498
    %v2500 = vlaneseq
    %v2501 = vshrl.u32 %v2500, 7
    %v2502 = vsub.s32 %v2499, %v2501
    %v2503 = vrot.slane %v2495, %v2502
    %v2505 = vunpack.c.l.s4 1934713408
    %v2506 = vunpack.c.0.s8 %v2505
    %v2507 = vlaneseq
    %v2508 = vshrl.u32 %v2507, 7
    %v2509 = vsub.s32 %v2506, %v2508
    %v2510 = vrot.slane %v2496, %v2509
    %v2511 = vcombine.low %v2446, %v2462
    %v2512 = vcombine.high %v2446, %v2462
    %v2514 = vunpack.c.l.s4 1934713408
    %v2515 = vunpack.c.0.s8 %v2514
    %v2516 = vlaneseq
    %v2517 = vshrl.u32 %v2516, 7
    %v2518 = vsub.s32 %v2515, %v2517
    %v2519 = vrot.slane %v2511, %v2518
    %v2521 = vunpack.c.l.s4 1934713408
    %v2522 = vunpack.c.0.s8 %v2521
    %v2523 = vlaneseq
    %v2524 = vshrl.u32 %v2523, 7
    %v2525 = vsub.s32 %v2522, %v2524
    %v2526 = vrot.slane %v2512, %v2525
    %v2527 = vcombine.low %v2471, %v2503
    %v2528 = vcombine.high %v2471, %v2503
    %v2529 = vcombine.low %v2478, %v2510
    %v2530 = vcombine.high %v2478, %v2510
    %v2531 = vcombine.low %v2487, %v2519
    %v2532 = vcombine.high %v2487, %v2519
    %v2533 = vcombine.low %v2494, %v2526
    %v2534 = vcombine.high %v2494, %v2526
    %v2535 = vcombine.low %v2140, %v2148
    %v2536 = vcombine.high %v2140, %v2148
    %v2538 = vunpack.c.l.s4 1983009808
    %v2539 = vunpack.c.0.s8 %v2538
    %v2540 = vlaneseq
    %v2541 = vshrl.u32 %v2540, 7
    %v2542 = vsub.s32 %v2539, %v2541
    %v2543 = vrot.slane %v2535, %v2542
    %v2545 = vunpack.c.l.s4 1983009808
    %v2546 = vunpack.c.0.s8 %v2545
    %v2547 = vlaneseq
    %v2548 = vshrl.u32 %v2547, 7
    %v2549 = vsub.s32 %v2546, %v2548
    %v2550 = vrot.slane %v2536, %v2549
    %v2551 = vcombine.low %v2144, %v2152
    %v2552 = vcombine.high %v2144, %v2152
    %v2554 = vunpack.c.l.s4 1983009808
    %v2555 = vunpack.c.0.s8 %v2554
    %v2556 = vlaneseq
    %v2557 = vshrl.u32 %v2556, 7
    %v2558 = vsub.s32 %v2555, %v2557
    %v2559 = vrot.slane %v2551, %v2558
    %v2561 = vunpack.c.l.s4 1983009808
    %v2562 = vunpack.c.0.s8 %v2561
    %v2563 = vlaneseq
    %v2564 = vshrl.u32 %v2563, 7
    %v2565 = vsub.s32 %v2562, %v2564
    %v2566 = vrot.slane %v2552, %v2565
    %v2567 = vcombine.low %v2164, %v2172
    %v2568 = vcombine.high %v2164, %v2172
    %v2570 = vunpack.c.l.s4 1983009808
    %v2571 = vunpack.c.0.s8 %v2570
    %v2572 = vlaneseq
    %v2573 = vshrl.u32 %v2572, 7
    %v2574 = vsub.s32 %v2571, %v2573
    %v2575 = vrot.slane %v2567, %v2574
    %v2577 = vunpack.c.l.s4 1983009808
    %v2578 = vunpack.c.0.s8 %v2577
    %v2579 = vlaneseq
    %v2580 = vshrl.u32 %v2579, 7
    %v2581 = vsub.s32 %v2578, %v2580
    %v2582 = vrot.slane %v2568, %v2581
    %v2583 = vcombine.low %v2168, %v2176
    %v2584 = vcombine.high %v2168, %v2176
    %v2586 = vunpack.c.l.s4 1983009808
    %v2587 = vunpack.c.0.s8 %v2586
    %v2588 = vlaneseq
    %v2589 = vshrl.u32 %v2588, 7
    %v2590 = vsub.s32 %v2587, %v2589
    %v2591 = vrot.slane %v2583, %v2590
    %v2593 = vunpack.c.l.s4 1983009808
    %v2594 = vunpack.c.0.s8 %v2593
    %v2595 = vlaneseq
    %v2596 = vshrl.u32 %v2595, 7
    %v2597 = vsub.s32 %v2594, %v2596
    %v2598 = vrot.slane %v2584, %v2597
    %v2599 = vcombine.low %v2543, %v2559
    %v2600 = vcombine.high %v2543, %v2559
    %v2602 = vunpack.c.l.s4 1934713408
    %v2603 = vunpack.c.0.s8 %v2602
    %v2604 = vlaneseq
    %v2605 = vshrl.u32 %v2604, 7
    %v2606 = vsub.s32 %v2603, %v2605
    %v2607 = vrot.slane %v2599, %v2606
    %v2609 = vunpack.c.l.s4 1934713408
    %v2610 = vunpack.c.0.s8 %v2609
    %v2611 = vlaneseq
    %v2612 = vshrl.u32 %v2611, 7
    %v2613 = vsub.s32 %v2610, %v2612
    %v2614 = vrot.slane %v2600, %v2613
    %v2615 = vcombine.low %v2550, %v2566
    %v2616 = vcombine.high %v2550, %v2566
    %v2618 = vunpack.c.l.s4 1934713408
    %v2619 = vunpack.c.0.s8 %v2618
    %v2620 = vlaneseq
    %v2621 = vshrl.u32 %v2620, 7
    %v2622 = vsub.s32 %v2619, %v2621
    %v2623 = vrot.slane %v2615, %v2622
    %v2625 = vunpack.c.l.s4 1934713408
    %v2626 = vunpack.c.0.s8 %v2625
    %v2627 = vlaneseq
    %v2628 = vshrl.u32 %v2627, 7
    %v2629 = vsub.s32 %v2626, %v2628
    %v2630 = vrot.slane %v2616, %v2629
    %v2631 = vcombine.low %v2575, %v2591
    %v2632 = vcombine.high %v2575, %v2591
    %v2634 = vunpack.c.l.s4 1934713408
    %v2635 = vunpack.c.0.s8 %v2634
    %v2636 = vlaneseq
    %v2637 = vshrl.u32 %v2636, 7
    %v2638 = vsub.s32 %v2635, %v2637
    %v2639 = vrot.slane %v2631, %v2638
    %v2641 = vunpack.c.l.s4 1934713408
    %v2642 = vunpack.c.0.s8 %v2641
    %v2643 = vlaneseq
    %v2644 = vshrl.u32 %v2643, 7
    %v2645 = vsub.s32 %v2642, %v2644
    %v2646 = vrot.slane %v2632, %v2645
    %v2647 = vcombine.low %v2582, %v2598
    %v2648 = vcombine.high %v2582, %v2598
    %v2650 = vunpack.c.l.s4 1934713408
    %v2651 = vunpack.c.0.s8 %v2650
    %v2652 = vlaneseq
    %v2653 = vshrl.u32 %v2652, 7
    %v2654 = vsub.s32 %v2651, %v2653
    %v2655 = vrot.slane %v2647, %v2654
    %v2657 = vunpack.c.l.s4 1934713408
    %v2658 = vunpack.c.0.s8 %v2657
    %v2659 = vlaneseq
    %v2660 = vshrl.u32 %v2659, 7
    %v2661 = vsub.s32 %v2658, %v2660
    %v2662 = vrot.slane %v2648, %v2661
    %v2663 = vcombine.low %v2607, %v2639
    %v2664 = vcombine.high %v2607, %v2639
    %v2665 = vcombine.low %v2614, %v2646
    %v2666 = vcombine.high %v2614, %v2646
    %v2667 = vcombine.low %v2623, %v2655
    %v2668 = vcombine.high %v2623, %v2655
    %v2669 = vcombine.low %v2630, %v2662
    %v2670 = vcombine.high %v2630, %v2662
    %v2671 = vcombine.low %v2189, %v2199
    %v2672 = vcombine.high %v2189, %v2199
    %v2674 = vunpack.c.l.s4 1983009808
    %v2675 = vunpack.c.0.s8 %v2674
    %v2676 = vlaneseq
    %v2677 = vshrl.u32 %v2676, 7
    %v2678 = vsub.s32 %v2675, %v2677
    %v2679 = vrot.slane %v2671, %v2678
    %v2681 = vunpack.c.l.s4 1983009808
    %v2682 = vunpack.c.0.s8 %v2681
    %v2683 = vlaneseq
    %v2684 = vshrl.u32 %v2683, 7
    %v2685 = vsub.s32 %v2682, %v2684
    %v2686 = vrot.slane %v2672, %v2685
    %v2687 = vcombine.low %v2194, %v2204
    %v2688 = vcombine.high %v2194, %v2204
    %v2690 = vunpack.c.l.s4 1983009808
    %v2691 = vunpack.c.0.s8 %v2690
    %v2692 = vlaneseq
    %v2693 = vshrl.u32 %v2692, 7
    %v2694 = vsub.s32 %v2691, %v2693
    %v2695 = vrot.slane %v2687, %v2694
    %v2697 = vunpack.c.l.s4 1983009808
    %v2698 = vunpack.c.0.s8 %v2697
    %v2699 = vlaneseq
    %v2700 = vshrl.u32 %v2699, 7
    %v2701 = vsub.s32 %v2698, %v2700
    %v2702 = vrot.slane %v2688, %v2701
    %v2703 = vcombine.low %v2216, %v2224
    %v2704 = vcombine.high %v2216, %v2224
    %v2706 = vunpack.c.l.s4 1983009808
    %v2707 = vunpack.c.0.s8 %v2706
    %v2708 = vlaneseq
    %v2709 = vshrl.u32 %v2708, 7
    %v2710 = vsub.s32 %v2707, %v2709
    %v2711 = vrot.slane %v2703, %v2710
    %v2713 = vunpack.c.l.s4 1983009808
    %v2714 = vunpack.c.0.s8 %v2713
    %v2715 = vlaneseq
    %v2716 = vshrl.u32 %v2715, 7
    %v2717 = vsub.s32 %v2714, %v2716
    %v2718 = vrot.slane %v2704, %v2717
    %v2719 = vcombine.low %v2220, %v2228
    %v2720 = vcombine.high %v2220, %v2228
    %v2722 = vunpack.c.l.s4 1983009808
    %v2723 = vunpack.c.0.s8 %v2722
    %v2724 = vlaneseq
    %v2725 = vshrl.u32 %v2724, 7
    %v2726 = vsub.s32 %v2723, %v2725
    %v2727 = vrot.slane %v2719, %v2726
    %v2729 = vunpack.c.l.s4 1983009808
    %v2730 = vunpack.c.0.s8 %v2729
    %v2731 = vlaneseq
    %v2732 = vshrl.u32 %v2731, 7
    %v2733 = vsub.s32 %v2730, %v2732
    %v2734 = vrot.slane %v2720, %v2733
    %v2735 = vcombine.low %v2679, %v2695
    %v2736 = vcombine.high %v2679, %v2695
    %v2738 = vunpack.c.l.s4 1934713408
    %v2739 = vunpack.c.0.s8 %v2738
    %v2740 = vlaneseq
    %v2741 = vshrl.u32 %v2740, 7
    %v2742 = vsub.s32 %v2739, %v2741
    %v2743 = vrot.slane %v2735, %v2742
    %v2745 = vunpack.c.l.s4 1934713408
    %v2746 = vunpack.c.0.s8 %v2745
    %v2747 = vlaneseq
    %v2748 = vshrl.u32 %v2747, 7
    %v2749 = vsub.s32 %v2746, %v2748
    %v2750 = vrot.slane %v2736, %v2749
    %v2751 = vcombine.low %v2686, %v2702
    %v2752 = vcombine.high %v2686, %v2702
    %v2754 = vunpack.c.l.s4 1934713408
    %v2755 = vunpack.c.0.s8 %v2754
    %v2756 = vlaneseq
    %v2757 = vshrl.u32 %v2756, 7
    %v2758 = vsub.s32 %v2755, %v2757
    %v2759 = vrot.slane %v2751, %v2758
    %v2761 = vunpack.c.l.s4 1934713408
    %v2762 = vunpack.c.0.s8 %v2761
    %v2763 = vlaneseq
    %v2764 = vshrl.u32 %v2763, 7
    %v2765 = vsub.s32 %v2762, %v2764
    %v2766 = vrot.slane %v2752, %v2765
    %v2767 = vcombine.low %v2711, %v2727
    %v2768 = vcombine.high %v2711, %v2727
    %v2770 = vunpack.c.l.s4 1934713408
    %v2771 = vunpack.c.0.s8 %v2770
    %v2772 = vlaneseq
    %v2773 = vshrl.u32 %v2772, 7
    %v2774 = vsub.s32 %v2771, %v2773
    %v2775 = vrot.slane %v2767, %v2774
    %v2777 = vunpack.c.l.s4 1934713408
    %v2778 = vunpack.c.0.s8 %v2777
    %v2779 = vlaneseq
    %v2780 = vshrl.u32 %v2779, 7
    %v2781 = vsub.s32 %v2778, %v2780
    %v2782 = vrot.slane %v2768, %v2781
    %v2783 = vcombine.low %v2718, %v2734
    %v2784 = vcombine.high %v2718, %v2734
    %v2786 = vunpack.c.l.s4 1934713408
    %v2787 = vunpack.c.0.s8 %v2786
    %v2788 = vlaneseq
    %v2789 = vshrl.u32 %v2788, 7
    %v2790 = vsub.s32 %v2787, %v2789
    %v2791 = vrot.slane %v2783, %v2790
    %v2793 = vunpack.c.l.s4 1934713408
    %v2794 = vunpack.c.0.s8 %v2793
    %v2795 = vlaneseq
    %v2796 = vshrl.u32 %v2795, 7
    %v2797 = vsub.s32 %v2794, %v2796
    %v2798 = vrot.slane %v2784, %v2797
    %v2799 = vcombine.low %v2743, %v2775
    %v2800 = vcombine.high %v2743, %v2775
    %v2801 = vcombine.low %v2750, %v2782
    %v2802 = vcombine.high %v2750, %v2782
    %v2803 = vcombine.low %v2759, %v2791
    %v2804 = vcombine.high %v2759, %v2791
    %v2805 = vcombine.low %v2766, %v2798
    %v2806 = vcombine.high %v2766, %v2798
    %v2807 = vcombine.low %v2240, %v2248
    %v2808 = vcombine.high %v2240, %v2248
    %v2810 = vunpack.c.l.s4 1983009808
    %v2811 = vunpack.c.0.s8 %v2810
    %v2812 = vlaneseq
    %v2813 = vshrl.u32 %v2812, 7
    %v2814 = vsub.s32 %v2811, %v2813
    %v2815 = vrot.slane %v2807, %v2814
    %v2817 = vunpack.c.l.s4 1983009808
    %v2818 = vunpack.c.0.s8 %v2817
    %v2819 = vlaneseq
    %v2820 = vshrl.u32 %v2819, 7
    %v2821 = vsub.s32 %v2818, %v2820
    %v2822 = vrot.slane %v2808, %v2821
    %v2823 = vcombine.low %v2244, %v2252
    %v2824 = vcombine.high %v2244, %v2252
    %v2826 = vunpack.c.l.s4 1983009808
    %v2827 = vunpack.c.0.s8 %v2826
    %v2828 = vlaneseq
    %v2829 = vshrl.u32 %v2828, 7
    %v2830 = vsub.s32 %v2827, %v2829
    %v2831 = vrot.slane %v2823, %v2830
    %v2833 = vunpack.c.l.s4 1983009808
    %v2834 = vunpack.c.0.s8 %v2833
    %v2835 = vlaneseq
    %v2836 = vshrl.u32 %v2835, 7
    %v2837 = vsub.s32 %v2834, %v2836
    %v2838 = vrot.slane %v2824, %v2837
    %v2839 = vcombine.low %v2815, %v2831
    %v2840 = vcombine.high %v2815, %v2831
    %v2842 = vunpack.c.l.s4 1934713408
    %v2843 = vunpack.c.0.s8 %v2842
    %v2844 = vlaneseq
    %v2845 = vshrl.u32 %v2844, 7
    %v2846 = vsub.s32 %v2843, %v2845
    %v2847 = vrot.slane %v2839, %v2846
    %v2849 = vunpack.c.l.s4 1934713408
    %v2850 = vunpack.c.0.s8 %v2849
    %v2851 = vlaneseq
    %v2852 = vshrl.u32 %v2851, 7
    %v2853 = vsub.s32 %v2850, %v2852
    %v2854 = vrot.slane %v2840, %v2853
    %v2855 = vcombine.low %v2822, %v2838
    %v2856 = vcombine.high %v2822, %v2838
    %v2858 = vunpack.c.l.s4 1934713408
    %v2859 = vunpack.c.0.s8 %v2858
    %v2860 = vlaneseq
    %v2861 = vshrl.u32 %v2860, 7
    %v2862 = vsub.s32 %v2859, %v2861
    %v2863 = vrot.slane %v2855, %v2862
    %v2865 = vunpack.c.l.s4 1934713408
    %v2866 = vunpack.c.0.s8 %v2865
    %v2867 = vlaneseq
    %v2868 = vshrl.u32 %v2867, 7
    %v2869 = vsub.s32 %v2866, %v2868
    %v2870 = vrot.slane %v2856, %v2869
    %v2871 = vcombine.high %v2847, 0.0
    %v2872 = vcombine.high %v2854, 0.0
    %v2873 = vcombine.high %v2863, 0.0
    %v2874 = vcombine.high %v2870, 0.0
    %v2875 = vcombine.low %v245, %v251
    %v2876 = vcombine.high %v245, %v251
    %v2878 = vunpack.c.l.s4 1983009808
    %v2879 = vunpack.c.0.s8 %v2878
    %v2880 = vlaneseq
    %v2881 = vshrl.u32 %v2880, 7
    %v2882 = vsub.s32 %v2879, %v2881
    %v2883 = vrot.slane %v2875, %v2882
    %v2885 = vunpack.c.l.s4 1983009808
    %v2886 = vunpack.c.0.s8 %v2885
    %v2887 = vlaneseq
    %v2888 = vshrl.u32 %v2887, 7
    %v2889 = vsub.s32 %v2886, %v2888
    %v2890 = vrot.slane %v2876, %v2889
    %v2891 = vcombine.low %v248, %v254
    %v2892 = vcombine.high %v248, %v254
    %v2894 = vunpack.c.l.s4 1983009808
    %v2895 = vunpack.c.0.s8 %v2894
    %v2896 = vlaneseq
    %v2897 = vshrl.u32 %v2896, 7
    %v2898 = vsub.s32 %v2895, %v2897
    %v2899 = vrot.slane %v2891, %v2898
    %v2901 = vunpack.c.l.s4 1983009808
    %v2902 = vunpack.c.0.s8 %v2901
    %v2903 = vlaneseq
    %v2904 = vshrl.u32 %v2903, 7
    %v2905 = vsub.s32 %v2902, %v2904
    %v2906 = vrot.slane %v2892, %v2905
    %v2907 = vcombine.low %v2062, %v2070
    %v2908 = vcombine.high %v2062, %v2070
    %v2910 = vunpack.c.l.s4 1983009808
    %v2911 = vunpack.c.0.s8 %v2910
    %v2912 = vlaneseq
    %v2913 = vshrl.u32 %v2912, 7
    %v2914 = vsub.s32 %v2911, %v2913
    %v2915 = vrot.slane %v2907, %v2914
    %v2917 = vunpack.c.l.s4 1983009808
    %v2918 = vunpack.c.0.s8 %v2917
    %v2919 = vlaneseq
    %v2920 = vshrl.u32 %v2919, 7
    %v2921 = vsub.s32 %v2918, %v2920
    %v2922 = vrot.slane %v2908, %v2921
    %v2923 = vcombine.low %v2066, %v2074
    %v2924 = vcombine.high %v2066, %v2074
    %v2926 = vunpack.c.l.s4 1983009808
    %v2927 = vunpack.c.0.s8 %v2926
    %v2928 = vlaneseq
    %v2929 = vshrl.u32 %v2928, 7
    %v2930 = vsub.s32 %v2927, %v2929
    %v2931 = vrot.slane %v2923, %v2930
    %v2933 = vunpack.c.l.s4 1983009808
    %v2934 = vunpack.c.0.s8 %v2933
    %v2935 = vlaneseq
    %v2936 = vshrl.u32 %v2935, 7
    %v2937 = vsub.s32 %v2934, %v2936
    %v2938 = vrot.slane %v2924, %v2937
    %v2939 = vcombine.low %v2883, %v2899
    %v2940 = vcombine.high %v2883, %v2899
    %v2942 = vunpack.c.l.s4 1934713408
    %v2943 = vunpack.c.0.s8 %v2942
    %v2944 = vlaneseq
    %v2945 = vshrl.u32 %v2944, 7
    %v2946 = vsub.s32 %v2943, %v2945
    %v2947 = vrot.slane %v2939, %v2946
    %v2949 = vunpack.c.l.s4 1934713408
    %v2950 = vunpack.c.0.s8 %v2949
    %v2951 = vlaneseq
    %v2952 = vshrl.u32 %v2951, 7
    %v2953 = vsub.s32 %v2950, %v2952
    %v2954 = vrot.slane %v2940, %v2953
    %v2955 = vcombine.low %v2890, %v2906
    %v2956 = vcombine.high %v2890, %v2906
    %v2958 = vunpack.c.l.s4 1934713408
    %v2959 = vunpack.c.0.s8 %v2958
    %v2960 = vlaneseq
    %v2961 = vshrl.u32 %v2960, 7
    %v2962 = vsub.s32 %v2959, %v2961
    %v2963 = vrot.slane %v2955, %v2962
    %v2965 = vunpack.c.l.s4 1934713408
    %v2966 = vunpack.c.0.s8 %v2965
    %v2967 = vlaneseq
    %v2968 = vshrl.u32 %v2967, 7
    %v2969 = vsub.s32 %v2966, %v2968
    %v2970 = vrot.slane %v2956, %v2969
    %v2971 = vcombine.low %v2915, %v2931
    %v2972 = vcombine.high %v2915, %v2931
    %v2974 = vunpack.c.l.s4 1934713408
    %v2975 = vunpack.c.0.s8 %v2974
    %v2976 = vlaneseq
    %v2977 = vshrl.u32 %v2976, 7
    %v2978 = vsub.s32 %v2975, %v2977
    %v2979 = vrot.slane %v2971, %v2978
    %v2981 = vunpack.c.l.s4 1934713408
    %v2982 = vunpack.c.0.s8 %v2981
    %v2983 = vlaneseq
    %v2984 = vshrl.u32 %v2983, 7
    %v2985 = vsub.s32 %v2982, %v2984
    %v2986 = vrot.slane %v2972, %v2985
    %v2987 = vcombine.low %v2922, %v2938
    %v2988 = vcombine.high %v2922, %v2938
    %v2990 = vunpack.c.l.s4 1934713408
    %v2991 = vunpack.c.0.s8 %v2990
    %v2992 = vlaneseq
    %v2993 = vshrl.u32 %v2992, 7
    %v2994 = vsub.s32 %v2991, %v2993
    %v2995 = vrot.slane %v2987, %v2994
    %v2997 = vunpack.c.l.s4 1934713408
    %v2998 = vunpack.c.0.s8 %v2997
    %v2999 = vlaneseq
    %v3000 = vshrl.u32 %v2999, 7
    %v3001 = vsub.s32 %v2998, %v3000
    %v3002 = vrot.slane %v2988, %v3001
    %v3003 = vcombine.low %v2947, %v2979
    %v3004 = vcombine.high %v2947, %v2979
    %v3005 = vcombine.low %v2954, %v2986
    %v3006 = vcombine.high %v2954, %v2986
    %v3007 = vcombine.low %v2963, %v2995
    %v3008 = vcombine.high %v2963, %v2995
    %v3009 = vcombine.low %v2970, %v3002
    %v3010 = vcombine.high %v2970, %v3002
    %v3011 = vcombine.low %v2086, %v2094
    %v3012 = vcombine.high %v2086, %v2094
    %v3014 = vunpack.c.l.s4 1983009808
    %v3015 = vunpack.c.0.s8 %v3014
    %v3016 = vlaneseq
    %v3017 = vshrl.u32 %v3016, 7
    %v3018 = vsub.s32 %v3015, %v3017
    %v3019 = vrot.slane %v3011, %v3018
    %v3021 = vunpack.c.l.s4 1983009808
    %v3022 = vunpack.c.0.s8 %v3021
    %v3023 = vlaneseq
    %v3024 = vshrl.u32 %v3023, 7
    %v3025 = vsub.s32 %v3022, %v3024
    %v3026 = vrot.slane %v3012, %v3025
    %v3027 = vcombine.low %v2090, %v2098
    %v3028 = vcombine.high %v2090, %v2098
    %v3030 = vunpack.c.l.s4 1983009808
    %v3031 = vunpack.c.0.s8 %v3030
    %v3032 = vlaneseq
    %v3033 = vshrl.u32 %v3032, 7
    %v3034 = vsub.s32 %v3031, %v3033
    %v3035 = vrot.slane %v3027, %v3034
    %v3037 = vunpack.c.l.s4 1983009808
    %v3038 = vunpack.c.0.s8 %v3037
    %v3039 = vlaneseq
    %v3040 = vshrl.u32 %v3039, 7
    %v3041 = vsub.s32 %v3038, %v3040
    %v3042 = vrot.slane %v3028, %v3041
    %v3043 = vcombine.low %v2115, %v2125
    %v3044 = vcombine.high %v2115, %v2125
    %v3046 = vunpack.c.l.s4 1983009808
    %v3047 = vunpack.c.0.s8 %v3046
    %v3048 = vlaneseq
    %v3049 = vshrl.u32 %v3048, 7
    %v3050 = vsub.s32 %v3047, %v3049
    %v3051 = vrot.slane %v3043, %v3050
    %v3053 = vunpack.c.l.s4 1983009808
    %v3054 = vunpack.c.0.s8 %v3053
    %v3055 = vlaneseq
    %v3056 = vshrl.u32 %v3055, 7
    %v3057 = vsub.s32 %v3054, %v3056
    %v3058 = vrot.slane %v3044, %v3057
    %v3059 = vcombine.low %v2120, %v2130
    %v3060 = vcombine.high %v2120, %v2130
    %v3062 = vunpack.c.l.s4 1983009808
    %v3063 = vunpack.c.0.s8 %v3062
    %v3064 = vlaneseq
    %v3065 = vshrl.u32 %v3064, 7
    %v3066 = vsub.s32 %v3063, %v3065
    %v3067 = vrot.slane %v3059, %v3066
    %v3069 = vunpack.c.l.s4 1983009808
    %v3070 = vunpack.c.0.s8 %v3069
    %v3071 = vlaneseq
    %v3072 = vshrl.u32 %v3071, 7
    %v3073 = vsub.s32 %v3070, %v3072
    %v3074 = vrot.slane %v3060, %v3073
    %v3075 = vcombine.low %v3019, %v3035
    %v3076 = vcombine.high %v3019, %v3035
    %v3078 = vunpack.c.l.s4 1934713408
    %v3079 = vunpack.c.0.s8 %v3078
    %v3080 = vlaneseq
    %v3081 = vshrl.u32 %v3080, 7
    %v3082 = vsub.s32 %v3079, %v3081
    %v3083 = vrot.slane %v3075, %v3082
    %v3085 = vunpack.c.l.s4 1934713408
    %v3086 = vunpack.c.0.s8 %v3085
    %v3087 = vlaneseq
    %v3088 = vshrl.u32 %v3087, 7
    %v3089 = vsub.s32 %v3086, %v3088
    %v3090 = vrot.slane %v3076, %v3089
    %v3091 = vcombine.low %v3026, %v3042
    %v3092 = vcombine.high %v3026, %v3042
    %v3094 = vunpack.c.l.s4 1934713408
    %v3095 = vunpack.c.0.s8 %v3094
    %v3096 = vlaneseq
    %v3097 = vshrl.u32 %v3096, 7
    %v3098 = vsub.s32 %v3095, %v3097
    %v3099 = vrot.slane %v3091, %v3098
    %v3101 = vunpack.c.l.s4 1934713408
    %v3102 = vunpack.c.0.s8 %v3101
    %v3103 = vlaneseq
    %v3104 = vshrl.u32 %v3103, 7
    %v3105 = vsub.s32 %v3102, %v3104
    %v3106 = vrot.slane %v3092, %v3105
    %v3107 = vcombine.low %v3051, %v3067
    %v3108 = vcombine.high %v3051, %v3067
    %v3110 = vunpack.c.l.s4 1934713408
    %v3111 = vunpack.c.0.s8 %v3110
    %v3112 = vlaneseq
    %v3113 = vshrl.u32 %v3112, 7
    %v3114 = vsub.s32 %v3111, %v3113
    %v3115 = vrot.slane %v3107, %v3114
    %v3117 = vunpack.c.l.s4 1934713408
    %v3118 = vunpack.c.0.s8 %v3117
    %v3119 = vlaneseq
    %v3120 = vshrl.u32 %v3119, 7
    %v3121 = vsub.s32 %v3118, %v3120
    %v3122 = vrot.slane %v3108, %v3121
    %v3123 = vcombine.low %v3058, %v3074
    %v3124 = vcombine.high %v3058, %v3074
    %v3126 = vunpack.c.l.s4 1934713408
    %v3127 = vunpack.c.0.s8 %v3126
    %v3128 = vlaneseq
    %v3129 = vshrl.u32 %v3128, 7
    %v3130 = vsub.s32 %v3127, %v3129
    %v3131 = vrot.slane %v3123, %v3130
    %v3133 = vunpack.c.l.s4 1934713408
    %v3134 = vunpack.c.0.s8 %v3133
    %v3135 = vlaneseq
    %v3136 = vshrl.u32 %v3135, 7
    %v3137 = vsub.s32 %v3134, %v3136
    %v3138 = vrot.slane %v3124, %v3137
    %v3139 = vcombine.low %v3083, %v3115
    %v3140 = vcombine.high %v3083, %v3115
    %v3141 = vcombine.low %v3090, %v3122
    %v3142 = vcombine.high %v3090, %v3122
    %v3143 = vcombine.low %v3099, %v3131
    %v3144 = vcombine.high %v3099, %v3131
    %v3145 = vcombine.low %v3106, %v3138
    %v3146 = vcombine.high %v3106, %v3138
    %v3147 = vcombine.low %v2142, %v2150
    %v3148 = vcombine.high %v2142, %v2150
    %v3150 = vunpack.c.l.s4 1983009808
    %v3151 = vunpack.c.0.s8 %v3150
    %v3152 = vlaneseq
    %v3153 = vshrl.u32 %v3152, 7
    %v3154 = vsub.s32 %v3151, %v3153
    %v3155 = vrot.slane %v3147, %v3154
    %v3157 = vunpack.c.l.s4 1983009808
    %v3158 = vunpack.c.0.s8 %v3157
    %v3159 = vlaneseq
    %v3160 = vshrl.u32 %v3159, 7
    %v3161 = vsub.s32 %v3158, %v3160
    %v3162 = vrot.slane %v3148, %v3161
    %v3163 = vcombine.low %v2146, %v2154
    %v3164 = vcombine.high %v2146, %v2154
    %v3166 = vunpack.c.l.s4 1983009808
    %v3167 = vunpack.c.0.s8 %v3166
    %v3168 = vlaneseq
    %v3169 = vshrl.u32 %v3168, 7
    %v3170 = vsub.s32 %v3167, %v3169
    %v3171 = vrot.slane %v3163, %v3170
    %v3173 = vunpack.c.l.s4 1983009808
    %v3174 = vunpack.c.0.s8 %v3173
    %v3175 = vlaneseq
    %v3176 = vshrl.u32 %v3175, 7
    %v3177 = vsub.s32 %v3174, %v3176
    %v3178 = vrot.slane %v3164, %v3177
    %v3179 = vcombine.low %v2166, %v2174
    %v3180 = vcombine.high %v2166, %v2174
    %v3182 = vunpack.c.l.s4 1983009808
    %v3183 = vunpack.c.0.s8 %v3182
    %v3184 = vlaneseq
    %v3185 = vshrl.u32 %v3184, 7
    %v3186 = vsub.s32 %v3183, %v3185
    %v3187 = vrot.slane %v3179, %v3186
    %v3189 = vunpack.c.l.s4 1983009808
    %v3190 = vunpack.c.0.s8 %v3189
    %v3191 = vlaneseq
    %v3192 = vshrl.u32 %v3191, 7
    %v3193 = vsub.s32 %v3190, %v3192
    %v3194 = vrot.slane %v3180, %v3193
    %v3195 = vcombine.low %v2170, %v2178
    %v3196 = vcombine.high %v2170, %v2178
    %v3198 = vunpack.c.l.s4 1983009808
    %v3199 = vunpack.c.0.s8 %v3198
    %v3200 = vlaneseq
    %v3201 = vshrl.u32 %v3200, 7
    %v3202 = vsub.s32 %v3199, %v3201
    %v3203 = vrot.slane %v3195, %v3202
    %v3205 = vunpack.c.l.s4 1983009808
    %v3206 = vunpack.c.0.s8 %v3205
    %v3207 = vlaneseq
    %v3208 = vshrl.u32 %v3207, 7
    %v3209 = vsub.s32 %v3206, %v3208
    %v3210 = vrot.slane %v3196, %v3209
    %v3211 = vcombine.low %v3155, %v3171
    %v3212 = vcombine.high %v3155, %v3171
    %v3214 = vunpack.c.l.s4 1934713408
    %v3215 = vunpack.c.0.s8 %v3214
    %v3216 = vlaneseq
    %v3217 = vshrl.u32 %v3216, 7
    %v3218 = vsub.s32 %v3215, %v3217
    %v3219 = vrot.slane %v3211, %v3218
    %v3221 = vunpack.c.l.s4 1934713408
    %v3222 = vunpack.c.0.s8 %v3221
    %v3223 = vlaneseq
    %v3224 = vshrl.u32 %v3223, 7
    %v3225 = vsub.s32 %v3222, %v3224
    %v3226 = vrot.slane %v3212, %v3225
    %v3227 = vcombine.low %v3162, %v3178
    %v3228 = vcombine.high %v3162, %v3178
    %v3230 = vunpack.c.l.s4 1934713408
    %v3231 = vunpack.c.0.s8 %v3230
    %v3232 = vlaneseq
    %v3233 = vshrl.u32 %v3232, 7
    %v3234 = vsub.s32 %v3231, %v3233
    %v3235 = vrot.slane %v3227, %v3234
    %v3237 = vunpack.c.l.s4 1934713408
    %v3238 = vunpack.c.0.s8 %v3237
    %v3239 = vlaneseq
    %v3240 = vshrl.u32 %v3239, 7
    %v3241 = vsub.s32 %v3238, %v3240
    %v3242 = vrot.slane %v3228, %v3241
    %v3243 = vcombine.low %v3187, %v3203
    %v3244 = vcombine.high %v3187, %v3203
    %v3246 = vunpack.c.l.s4 1934713408
    %v3247 = vunpack.c.0.s8 %v3246
    %v3248 = vlaneseq
    %v3249 = vshrl.u32 %v3248, 7
    %v3250 = vsub.s32 %v3247, %v3249
    %v3251 = vrot.slane %v3243, %v3250
    %v3253 = vunpack.c.l.s4 1934713408
    %v3254 = vunpack.c.0.s8 %v3253
    %v3255 = vlaneseq
    %v3256 = vshrl.u32 %v3255, 7
    %v3257 = vsub.s32 %v3254, %v3256
    %v3258 = vrot.slane %v3244, %v3257
    %v3259 = vcombine.low %v3194, %v3210
    %v3260 = vcombine.high %v3194, %v3210
    %v3262 = vunpack.c.l.s4 1934713408
    %v3263 = vunpack.c.0.s8 %v3262
    %v3264 = vlaneseq
    %v3265 = vshrl.u32 %v3264, 7
    %v3266 = vsub.s32 %v3263, %v3265
    %v3267 = vrot.slane %v3259, %v3266
    %v3269 = vunpack.c.l.s4 1934713408
    %v3270 = vunpack.c.0.s8 %v3269
    %v3271 = vlaneseq
    %v3272 = vshrl.u32 %v3271, 7
    %v3273 = vsub.s32 %v3270, %v3272
    %v3274 = vrot.slane %v3260, %v3273
    %v3275 = vcombine.low %v3219, %v3251
    %v3276 = vcombine.high %v3219, %v3251
    %v3277 = vcombine.low %v3226, %v3258
    %v3278 = vcombine.high %v3226, %v3258
    %v3279 = vcombine.low %v3235, %v3267
    %v3280 = vcombine.high %v3235, %v3267
    %v3281 = vcombine.low %v3242, %v3274
    %v3282 = vcombine.high %v3242, %v3274
    %v3283 = vcombine.low %v2191, %v2201
    %v3284 = vcombine.high %v2191, %v2201
    %v3286 = vunpack.c.l.s4 1983009808
    %v3287 = vunpack.c.0.s8 %v3286
    %v3288 = vlaneseq
    %v3289 = vshrl.u32 %v3288, 7
    %v3290 = vsub.s32 %v3287, %v3289
    %v3291 = vrot.slane %v3283, %v3290
    %v3293 = vunpack.c.l.s4 1983009808
    %v3294 = vunpack.c.0.s8 %v3293
    %v3295 = vlaneseq
    %v3296 = vshrl.u32 %v3295, 7
    %v3297 = vsub.s32 %v3294, %v3296
    %v3298 = vrot.slane %v3284, %v3297
    %v3299 = vcombine.low %v2196, %v2206
    %v3300 = vcombine.high %v2196, %v2206
    %v3302 = vunpack.c.l.s4 1983009808
    %v3303 = vunpack.c.0.s8 %v3302
    %v3304 = vlaneseq
    %v3305 = vshrl.u32 %v3304, 7
    %v3306 = vsub.s32 %v3303, %v3305
    %v3307 = vrot.slane %v3299, %v3306
    %v3309 = vunpack.c.l.s4 1983009808
    %v3310 = vunpack.c.0.s8 %v3309
    %v3311 = vlaneseq
    %v3312 = vshrl.u32 %v3311, 7
    %v3313 = vsub.s32 %v3310, %v3312
    %v3314 = vrot.slane %v3300, %v3313
    %v3315 = vcombine.low %v2218, %v2226
    %v3316 = vcombine.high %v2218, %v2226
    %v3318 = vunpack.c.l.s4 1983009808
    %v3319 = vunpack.c.0.s8 %v3318
    %v3320 = vlaneseq
    %v3321 = vshrl.u32 %v3320, 7
    %v3322 = vsub.s32 %v3319, %v3321
    %v3323 = vrot.slane %v3315, %v3322
    %v3325 = vunpack.c.l.s4 1983009808
    %v3326 = vunpack.c.0.s8 %v3325
    %v3327 = vlaneseq
    %v3328 = vshrl.u32 %v3327, 7
    %v3329 = vsub.s32 %v3326, %v3328
    %v3330 = vrot.slane %v3316, %v3329
    %v3331 = vcombine.low %v2222, %v2230
    %v3332 = vcombine.high %v2222, %v2230
    %v3334 = vunpack.c.l.s4 1983009808
    %v3335 = vunpack.c.0.s8 %v3334
    %v3336 = vlaneseq
    %v3337 = vshrl.u32 %v3336, 7
    %v3338 = vsub.s32 %v3335, %v3337
    %v3339 = vrot.slane %v3331, %v3338
    %v3341 = vunpack.c.l.s4 1983009808
    %v3342 = vunpack.c.0.s8 %v3341
    %v3343 = vlaneseq
    %v3344 = vshrl.u32 %v3343, 7
    %v3345 = vsub.s32 %v3342, %v3344
    %v3346 = vrot.slane %v3332, %v3345
    %v3347 = vcombine.low %v3291, %v3307
    %v3348 = vcombine.high %v3291, %v3307
    %v3350 = vunpack.c.l.s4 1934713408
    %v3351 = vunpack.c.0.s8 %v3350
    %v3352 = vlaneseq
    %v3353 = vshrl.u32 %v3352, 7
    %v3354 = vsub.s32 %v3351, %v3353
    %v3355 = vrot.slane %v3347, %v3354
    %v3357 = vunpack.c.l.s4 1934713408
    %v3358 = vunpack.c.0.s8 %v3357
    %v3359 = vlaneseq
    %v3360 = vshrl.u32 %v3359, 7
    %v3361 = vsub.s32 %v3358, %v3360
    %v3362 = vrot.slane %v3348, %v3361
    %v3363 = vcombine.low %v3298, %v3314
    %v3364 = vcombine.high %v3298, %v3314
    %v3366 = vunpack.c.l.s4 1934713408
    %v3367 = vunpack.c.0.s8 %v3366
    %v3368 = vlaneseq
    %v3369 = vshrl.u32 %v3368, 7
    %v3370 = vsub.s32 %v3367, %v3369
    %v3371 = vrot.slane %v3363, %v3370
    %v3373 = vunpack.c.l.s4 1934713408
    %v3374 = vunpack.c.0.s8 %v3373
    %v3375 = vlaneseq
    %v3376 = vshrl.u32 %v3375, 7
    %v3377 = vsub.s32 %v3374, %v3376
    %v3378 = vrot.slane %v3364, %v3377
    %v3379 = vcombine.low %v3323, %v3339
    %v3380 = vcombine.high %v3323, %v3339
    %v3382 = vunpack.c.l.s4 1934713408
    %v3383 = vunpack.c.0.s8 %v3382
    %v3384 = vlaneseq
    %v3385 = vshrl.u32 %v3384, 7
    %v3386 = vsub.s32 %v3383, %v3385
    %v3387 = vrot.slane %v3379, %v3386
    %v3389 = vunpack.c.l.s4 1934713408
    %v3390 = vunpack.c.0.s8 %v3389
    %v3391 = vlaneseq
    %v3392 = vshrl.u32 %v3391, 7
    %v3393 = vsub.s32 %v3390, %v3392
    %v3394 = vrot.slane %v3380, %v3393
    %v3395 = vcombine.low %v3330, %v3346
    %v3396 = vcombine.high %v3330, %v3346
    %v3398 = vunpack.c.l.s4 1934713408
    %v3399 = vunpack.c.0.s8 %v3398
    %v3400 = vlaneseq
    %v3401 = vshrl.u32 %v3400, 7
    %v3402 = vsub.s32 %v3399, %v3401
    %v3403 = vrot.slane %v3395, %v3402
    %v3405 = vunpack.c.l.s4 1934713408
    %v3406 = vunpack.c.0.s8 %v3405
    %v3407 = vlaneseq
    %v3408 = vshrl.u32 %v3407, 7
    %v3409 = vsub.s32 %v3406, %v3408
    %v3410 = vrot.slane %v3396, %v3409
    %v3411 = vcombine.low %v3355, %v3387
    %v3412 = vcombine.high %v3355, %v3387
    %v3413 = vcombine.low %v3362, %v3394
    %v3414 = vcombine.high %v3362, %v3394
    %v3415 = vcombine.low %v3371, %v3403
    %v3416 = vcombine.high %v3371, %v3403
    %v3417 = vcombine.low %v3378, %v3410
    %v3418 = vcombine.high %v3378, %v3410
    %v3419 = vcombine.low %v2242, %v2250
    %v3420 = vcombine.high %v2242, %v2250
    %v3422 = vunpack.c.l.s4 1983009808
    %v3423 = vunpack.c.0.s8 %v3422
    %v3424 = vlaneseq
    %v3425 = vshrl.u32 %v3424, 7
    %v3426 = vsub.s32 %v3423, %v3425
    %v3427 = vrot.slane %v3419, %v3426
    %v3429 = vunpack.c.l.s4 1983009808
    %v3430 = vunpack.c.0.s8 %v3429
    %v3431 = vlaneseq
    %v3432 = vshrl.u32 %v3431, 7
    %v3433 = vsub.s32 %v3430, %v3432
    %v3434 = vrot.slane %v3420, %v3433
    %v3435 = vcombine.low %v2246, %v2254
    %v3436 = vcombine.high %v2246, %v2254
    %v3438 = vunpack.c.l.s4 1983009808
    %v3439 = vunpack.c.0.s8 %v3438
    %v3440 = vlaneseq
    %v3441 = vshrl.u32 %v3440, 7
    %v3442 = vsub.s32 %v3439, %v3441
    %v3443 = vrot.slane %v3435, %v3442
    %v3445 = vunpack.c.l.s4 1983009808
    %v3446 = vunpack.c.0.s8 %v3445
    %v3447 = vlaneseq
    %v3448 = vshrl.u32 %v3447, 7
    %v3449 = vsub.s32 %v3446, %v3448
    %v3450 = vrot.slane %v3436, %v3449
    %v3451 = vcombine.low %v3427, %v3443
    %v3452 = vcombine.high %v3427, %v3443
    %v3454 = vunpack.c.l.s4 1934713408
    %v3455 = vunpack.c.0.s8 %v3454
    %v3456 = vlaneseq
    %v3457 = vshrl.u32 %v3456, 7
    %v3458 = vsub.s32 %v3455, %v3457
    %v3459 = vrot.slane %v3451, %v3458
    %v3461 = vunpack.c.l.s4 1934713408
    %v3462 = vunpack.c.0.s8 %v3461
    %v3463 = vlaneseq
    %v3464 = vshrl.u32 %v3463, 7
    %v3465 = vsub.s32 %v3462, %v3464
    %v3466 = vrot.slane %v3452, %v3465
    %v3467 = vcombine.low %v3434, %v3450
    %v3468 = vcombine.high %v3434, %v3450
    %v3470 = vunpack.c.l.s4 1934713408
    %v3471 = vunpack.c.0.s8 %v3470
    %v3472 = vlaneseq
    %v3473 = vshrl.u32 %v3472, 7
    %v3474 = vsub.s32 %v3471, %v3473
    %v3475 = vrot.slane %v3467, %v3474
    %v3477 = vunpack.c.l.s4 1934713408
    %v3478 = vunpack.c.0.s8 %v3477
    %v3479 = vlaneseq
    %v3480 = vshrl.u32 %v3479, 7
    %v3481 = vsub.s32 %v3478, %v3480
    %v3482 = vrot.slane %v3468, %v3481
    %v3483 = vcombine.high %v3459, 0.0
    %v3484 = vcombine.high %v3466, 0.0
    %v3485 = vcombine.high %v3475, 0.0
    %v3486 = vcombine.high %v3482, 0.0
    %3492 = vrot.lane.b32.xlu0 %v2392, 16
    %v3493 = vpop.permute.xlu0 %3492
    %3494 = vrot.lane.b32.xlu0 %v2528, 16
    %v3495 = vpop.permute.xlu0 %3494
    %3496 = vrot.lane.b32.xlu0 %v2664, 16
    %v3497 = vpop.permute.xlu0 %3496
    %3498 = vrot.lane.b32.xlu0 %v2800, 16
    %v3499 = vpop.permute.xlu0 %3498
    %3500 = vrot.lane.b32.xlu0 %v2871, 16
    %v3501 = vpop.permute.xlu0 %3500
    %3512 = vrot.lane.b32.xlu0 %v2393, 32
    %v3513 = vpop.permute.xlu0 %3512
    %3514 = vrot.lane.b32.xlu0 %v2529, 32
    %v3515 = vpop.permute.xlu0 %3514
    %3516 = vrot.lane.b32.xlu0 %v2665, 32
    %v3517 = vpop.permute.xlu0 %3516
    %3518 = vrot.lane.b32.xlu0 %v2801, 32
    %v3519 = vpop.permute.xlu0 %3518
    %3520 = vrot.lane.b32.xlu0 %v2854, 32
    %v3521 = vpop.permute.xlu0 %3520
    %3532 = vrot.lane.b32.xlu0 %v2394, 48
    %v3533 = vpop.permute.xlu0 %3532
    %3534 = vrot.lane.b32.xlu0 %v2530, 48
    %v3535 = vpop.permute.xlu0 %3534
    %3536 = vrot.lane.b32.xlu0 %v2666, 48
    %v3537 = vpop.permute.xlu0 %3536
    %3538 = vrot.lane.b32.xlu0 %v2802, 48
    %v3539 = vpop.permute.xlu0 %3538
    %3540 = vrot.lane.b32.xlu0 %v2872, 48
    %v3541 = vpop.permute.xlu0 %3540
    %3552 = vrot.lane.b32.xlu0 %v2395, 64
    %v3553 = vpop.permute.xlu0 %3552
    %3554 = vrot.lane.b32.xlu0 %v2531, 64
    %v3555 = vpop.permute.xlu0 %3554
    %3556 = vrot.lane.b32.xlu0 %v2667, 64
    %v3557 = vpop.permute.xlu0 %3556
    %3558 = vrot.lane.b32.xlu0 %v2803, 64
    %v3559 = vpop.permute.xlu0 %3558
    %3560 = vrot.lane.b32.xlu0 %v2863, 64
    %v3561 = vpop.permute.xlu0 %3560
    %3572 = vrot.lane.b32.xlu0 %v2396, 80
    %v3573 = vpop.permute.xlu0 %3572
    %3574 = vrot.lane.b32.xlu0 %v2532, 80
    %v3575 = vpop.permute.xlu0 %3574
    %3576 = vrot.lane.b32.xlu0 %v2668, 80
    %v3577 = vpop.permute.xlu0 %3576
    %3578 = vrot.lane.b32.xlu0 %v2804, 80
    %v3579 = vpop.permute.xlu0 %3578
    %3580 = vrot.lane.b32.xlu0 %v2873, 80
    %v3581 = vpop.permute.xlu0 %3580
    %3592 = vrot.lane.b32.xlu0 %v2397, 96
    %v3593 = vpop.permute.xlu0 %3592
    %3594 = vrot.lane.b32.xlu0 %v2533, 96
    %v3595 = vpop.permute.xlu0 %3594
    %3596 = vrot.lane.b32.xlu0 %v2669, 96
    %v3597 = vpop.permute.xlu0 %3596
    %3598 = vrot.lane.b32.xlu0 %v2805, 96
    %v3599 = vpop.permute.xlu0 %3598
    %3600 = vrot.lane.b32.xlu0 %v2870, 96
    %v3601 = vpop.permute.xlu0 %3600
    %3612 = vrot.lane.b32.xlu0 %v2398, 112
    %v3613 = vpop.permute.xlu0 %3612
    %3614 = vrot.lane.b32.xlu0 %v2534, 112
    %v3615 = vpop.permute.xlu0 %3614
    %3616 = vrot.lane.b32.xlu0 %v2670, 112
    %v3617 = vpop.permute.xlu0 %3616
    %3618 = vrot.lane.b32.xlu0 %v2806, 112
    %v3619 = vpop.permute.xlu0 %3618
    %3620 = vrot.lane.b32.xlu0 %v2874, 112
    %v3621 = vpop.permute.xlu0 %3620
    %3632 = vrot.lane.b32.xlu0 %v3004, 16
    %v3633 = vpop.permute.xlu0 %3632
    %3634 = vrot.lane.b32.xlu0 %v3140, 16
    %v3635 = vpop.permute.xlu0 %3634
    %3636 = vrot.lane.b32.xlu0 %v3276, 16
    %v3637 = vpop.permute.xlu0 %3636
    %3638 = vrot.lane.b32.xlu0 %v3412, 16
    %v3639 = vpop.permute.xlu0 %3638
    %3640 = vrot.lane.b32.xlu0 %v3483, 16
    %v3641 = vpop.permute.xlu0 %3640
    %3652 = vrot.lane.b32.xlu0 %v3005, 32
    %v3653 = vpop.permute.xlu0 %3652
    %3654 = vrot.lane.b32.xlu0 %v3141, 32
    %v3655 = vpop.permute.xlu0 %3654
    %3656 = vrot.lane.b32.xlu0 %v3277, 32
    %v3657 = vpop.permute.xlu0 %3656
    %3658 = vrot.lane.b32.xlu0 %v3413, 32
    %v3659 = vpop.permute.xlu0 %3658
    %3660 = vrot.lane.b32.xlu0 %v3466, 32
    %v3661 = vpop.permute.xlu0 %3660
    %3672 = vrot.lane.b32.xlu0 %v3006, 48
    %v3673 = vpop.permute.xlu0 %3672
    %3674 = vrot.lane.b32.xlu0 %v3142, 48
    %v3675 = vpop.permute.xlu0 %3674
    %3676 = vrot.lane.b32.xlu0 %v3278, 48
    %v3677 = vpop.permute.xlu0 %3676
    %3678 = vrot.lane.b32.xlu0 %v3414, 48
    %v3679 = vpop.permute.xlu0 %3678
    %3680 = vrot.lane.b32.xlu0 %v3484, 48
    %v3681 = vpop.permute.xlu0 %3680
    %3692 = vrot.lane.b32.xlu0 %v3007, 64
    %v3693 = vpop.permute.xlu0 %3692
    %3694 = vrot.lane.b32.xlu0 %v3143, 64
    %v3695 = vpop.permute.xlu0 %3694
    %3696 = vrot.lane.b32.xlu0 %v3279, 64
    %v3697 = vpop.permute.xlu0 %3696
    %3698 = vrot.lane.b32.xlu0 %v3415, 64
    %v3699 = vpop.permute.xlu0 %3698
    %3700 = vrot.lane.b32.xlu0 %v3475, 64
    %v3701 = vpop.permute.xlu0 %3700
    %3712 = vrot.lane.b32.xlu0 %v3008, 80
    %v3713 = vpop.permute.xlu0 %3712
    %3714 = vrot.lane.b32.xlu0 %v3144, 80
    %v3715 = vpop.permute.xlu0 %3714
    %3716 = vrot.lane.b32.xlu0 %v3280, 80
    %v3717 = vpop.permute.xlu0 %3716
    %3718 = vrot.lane.b32.xlu0 %v3416, 80
    %v3719 = vpop.permute.xlu0 %3718
    %3720 = vrot.lane.b32.xlu0 %v3485, 80
    %v3721 = vpop.permute.xlu0 %3720
    %3732 = vrot.lane.b32.xlu0 %v3009, 96
    %v3733 = vpop.permute.xlu0 %3732
    %3734 = vrot.lane.b32.xlu0 %v3145, 96
    %v3735 = vpop.permute.xlu0 %3734
    %3736 = vrot.lane.b32.xlu0 %v3281, 96
    %v3737 = vpop.permute.xlu0 %3736
    %3738 = vrot.lane.b32.xlu0 %v3417, 96
    %v3739 = vpop.permute.xlu0 %3738
    %3740 = vrot.lane.b32.xlu0 %v3482, 96
    %v3741 = vpop.permute.xlu0 %3740
    %3752 = vrot.lane.b32.xlu0 %v3010, 112
    %v3753 = vpop.permute.xlu0 %3752
    %3754 = vrot.lane.b32.xlu0 %v3146, 112
    %v3755 = vpop.permute.xlu0 %3754
    %3756 = vrot.lane.b32.xlu0 %v3282, 112
    %v3757 = vpop.permute.xlu0 %3756
    %3758 = vrot.lane.b32.xlu0 %v3418, 112
    %v3759 = vpop.permute.xlu0 %3758
    %3760 = vrot.lane.b32.xlu0 %v3486, 112
    %v3761 = vpop.permute.xlu0 %3760
    %v3767 = vsel %vm1974, %v2391, %v3493
    %v3768 = vsel %vm1974, %v2527, %v3495
    %v3769 = vsel %vm1974, %v2663, %v3497
    %v3770 = vsel %vm1974, %v2799, %v3499
    %v3771 = vsel %vm1974, %v2847, %v3501
    %v3772 = vsel %vm1980, %v3767, %v3513
    %v3773 = vsel %vm1980, %v3768, %v3515
    %v3774 = vsel %vm1980, %v3769, %v3517
    %v3775 = vsel %vm1980, %v3770, %v3519
    %v3776 = vsel %vm1980, %v3771, %v3521
    %v3777 = vsel %vm1986, %v3772, %v3533
    %v3778 = vsel %vm1986, %v3773, %v3535
    %v3779 = vsel %vm1986, %v3774, %v3537
    %v3780 = vsel %vm1986, %v3775, %v3539
    %v3781 = vsel %vm1986, %v3776, %v3541
    %v3782 = vsel %vm1992, %v3777, %v3553
    %v3783 = vsel %vm1992, %v3778, %v3555
    %v3784 = vsel %vm1992, %v3779, %v3557
    %v3785 = vsel %vm1992, %v3780, %v3559
    %v3786 = vsel %vm1992, %v3781, %v3561
    %v3787 = vsel %vm1998, %v3782, %v3573
    %v3788 = vsel %vm1998, %v3783, %v3575
    %v3789 = vsel %vm1998, %v3784, %v3577
    %v3790 = vsel %vm1998, %v3785, %v3579
    %v3791 = vsel %vm1998, %v3786, %v3581
    %v3792 = vsel %vm2004, %v3787, %v3593
    %v3793 = vsel %vm2004, %v3788, %v3595
    %v3794 = vsel %vm2004, %v3789, %v3597
    %v3795 = vsel %vm2004, %v3790, %v3599
    %v3796 = vsel %vm2004, %v3791, %v3601
    %v3797 = vsel %vm2010, %v3792, %v3613
    %v3798 = vsel %vm2010, %v3793, %v3615
    %v3799 = vsel %vm2010, %v3794, %v3617
    %v3800 = vsel %vm2010, %v3795, %v3619
    %v3801 = vsel %vm2010, %v3796, %v3621
    %v3802 = vsel %vm1974, %v3003, %v3633
    %v3803 = vsel %vm1974, %v3139, %v3635
    %v3804 = vsel %vm1974, %v3275, %v3637
    %v3805 = vsel %vm1974, %v3411, %v3639
    %v3806 = vsel %vm1974, %v3459, %v3641
    %v3807 = vsel %vm1980, %v3802, %v3653
    %v3808 = vsel %vm1980, %v3803, %v3655
    %v3809 = vsel %vm1980, %v3804, %v3657
    %v3810 = vsel %vm1980, %v3805, %v3659
    %v3811 = vsel %vm1980, %v3806, %v3661
    %v3812 = vsel %vm1986, %v3807, %v3673
    %v3813 = vsel %vm1986, %v3808, %v3675
    %v3814 = vsel %vm1986, %v3809, %v3677
    %v3815 = vsel %vm1986, %v3810, %v3679
    %v3816 = vsel %vm1986, %v3811, %v3681
    %v3817 = vsel %vm1992, %v3812, %v3693
    %v3818 = vsel %vm1992, %v3813, %v3695
    %v3819 = vsel %vm1992, %v3814, %v3697
    %v3820 = vsel %vm1992, %v3815, %v3699
    %v3821 = vsel %vm1992, %v3816, %v3701
    %v3822 = vsel %vm1998, %v3817, %v3713
    %v3823 = vsel %vm1998, %v3818, %v3715
    %v3824 = vsel %vm1998, %v3819, %v3717
    %v3825 = vsel %vm1998, %v3820, %v3719
    %v3826 = vsel %vm1998, %v3821, %v3721
    %v3827 = vsel %vm2004, %v3822, %v3733
    %v3828 = vsel %vm2004, %v3823, %v3735
    %v3829 = vsel %vm2004, %v3824, %v3737
    %v3830 = vsel %vm2004, %v3825, %v3739
    %v3831 = vsel %vm2004, %v3826, %v3741
    %v3832 = vsel %vm2010, %v3827, %v3753
    %v3833 = vsel %vm2010, %v3828, %v3755
    %v3834 = vsel %vm2010, %v3829, %v3757
    %v3835 = vsel %vm2010, %v3830, %v3759
    %v3836 = vsel %vm2010, %v3831, %v3761
    %v3837 = vld [vmem:[%s1] sm:$0xff]
    %v3838 = vld [vmem:[%s2] sm:$0xff]
    %3840 = vset.pattern.permute.xlu0 0
    %3841 = vperm.xlu0 %3840, %v3838
    %v3842 = vpop.permute.xlu0 %3841
    %vm3844 = vcmask 293888
    %v3846 = vsel %vm3844, %v3837, 0
    %v3849 = vsel %vm393, %v2015, 0
    %v3852 = vsel %vm393, %v2050, 0
    %v3855 = vsel %vm393, %v3801, 0
    %v3858 = vsel %vm393, %v3836, 0
    %3860 = vmatprep.subr.mxu0 %v2046
    %3861 = vmatpush1.msra.mxu0 %v2011
    %3862 = vmatprep.subr.mxu0 %v2047
    %3863 = vmatpush1.msra.mxu0 %v2012
    %3864 = vmatprep.subr.mxu0 %v2048
    %3865 = vmatpush1.msra.mxu0 %v2013
    %3866 = vmatprep.subr.mxu0 %v2049
    %3867 = vmatpush1.msra.mxu0 %v2014
    %3868 = vmatprep.subr.mxu0 %v3852
    %3869 = vmatpush1.msra.mxu0 %v3849
    %3870 = vmatprep.subr.mxu0 0.0
    %3871 = vmatpush1.msra.mxu0 0.0
    %3872 = vmatprep.subr.mxu0 0.0
    %3873 = vmatpush1.msra.mxu0 0.0
    %3874 = vmatprep.subr.mxu0 0.0
    %3875 = vmatpush1.msra.mxu0 0.0
    %3876 = vmatprep.subr.mxu0 0.0
    %3877 = vmatpush1.msra.mxu0 0.0
    %3878 = vmatprep.subr.mxu0 0.0
    %3879 = vmatpush1.msra.mxu0 0.0
    %3880 = vmatprep.subr.mxu0 0.0
    %3881 = vmatpush1.msra.mxu0 0.0
    %3882 = vmatprep.subr.mxu0 0.0
    %3883 = vmatpush1.msra.mxu0 0.0
    %3884 = vmatprep.subr.mxu0 0.0
    %3885 = vmatpush1.msra.mxu0 0.0
    %3886 = vmatprep.subr.mxu0 0.0
    %3887 = vmatpush1.msra.mxu0 0.0
    %3888 = vmatprep.subr.mxu0 0.0
    %3889 = vmatpush1.msra.mxu0 0.0
    %3890 = vmatprep.subr.mxu0 0.0
    %3891 = vmatpush1.msra.mxu0 0.0
    %3892 = vmatprep.subr.mxu0 0.0
    %3893 = vmatpush1.msra.mxu0 0.0
    %3894 = vmatprep.subr.mxu0 0.0
    %3895 = vmatpush1.msra.mxu0 0.0
    %3896 = vmatprep.subr.mxu0 0.0
    %3897 = vmatpush1.msra.mxu0 0.0
    %3898 = vmatprep.subr.mxu0 0.0
    %3899 = vmatpush1.msra.mxu0 0.0
    %3900 = vmatprep.subr.mxu0 0.0
    %3901 = vmatpush1.msra.mxu0 0.0
    %3902 = vmatprep.subr.mxu0 0.0
    %3903 = vmatpush1.msra.mxu0 0.0
    %3904 = vmatprep.subr.mxu0 0.0
    %3905 = vmatpush1.msra.mxu0 0.0
    %3906 = vmatprep.subr.mxu0 0.0
    %3907 = vmatpush1.msra.mxu0 0.0
    %3908 = vmatprep.subr.mxu0 0.0
    %3909 = vmatpush1.msra.mxu0 0.0
    %3910 = vmatprep.subr.mxu0 0.0
    %3911 = vmatpush1.msra.mxu0 0.0
    %3912 = vmatprep.subr.mxu0 0.0
    %3913 = vmatpush1.msra.mxu0 0.0
    %3914 = vmatprep.subr.mxu0 0.0
    %3915 = vmatpush1.msra.mxu0 0.0
    %3916 = vmatprep.subr.mxu0 0.0
    %3917 = vmatpush1.msra.mxu0 0.0
    %3918 = vmatprep.subr.mxu0 0.0
    %3919 = vmatpush1.msra.mxu0 0.0
    %3920 = vmatprep.subr.mxu0 0.0
    %3921 = vmatpush1.msra.mxu0 0.0
    %3922 = vmatprep.subr.mxu0 0.0
    %3923 = vmatpush1.msra.mxu0 0.0
    %3924 = vmatprep.mubr.f32.mxu0 0.0
    %3925 = vmatmul.mubr.f32.gmra.mrb[0].mxu0 %v3846
    %v3926 = vpop.f32.mrb[0].mxu0
    %v3927 = vadd.f32 %v3842, %v3926
    %v3928 = vpop.f32.mrb[0].mxu0
    %v3929 = vadd.f32 %v3842, %v3928
    %3930 = vdwg.mxu0
    %3931 = vmatprep.subr.mxu0 %v3832
    %3932 = vmatpush1.msra.mxu0 %v3797
    %3933 = vmatprep.subr.mxu0 %v3833
    %3934 = vmatpush1.msra.mxu0 %v3798
    %3935 = vmatprep.subr.mxu0 %v3834
    %3936 = vmatpush1.msra.mxu0 %v3799
    %3937 = vmatprep.subr.mxu0 %v3835
    %3938 = vmatpush1.msra.mxu0 %v3800
    %3939 = vmatprep.subr.mxu0 %v3858
    %3940 = vmatpush1.msra.mxu0 %v3855
    %3941 = vmatprep.subr.mxu0 0.0
    %3942 = vmatpush1.msra.mxu0 0.0
    %3943 = vmatprep.subr.mxu0 0.0
    %3944 = vmatpush1.msra.mxu0 0.0
    %3945 = vmatprep.subr.mxu0 0.0
    %3946 = vmatpush1.msra.mxu0 0.0
    %3947 = vmatprep.subr.mxu0 0.0
    %3948 = vmatpush1.msra.mxu0 0.0
    %3949 = vmatprep.subr.mxu0 0.0
    %3950 = vmatpush1.msra.mxu0 0.0
    %3951 = vmatprep.subr.mxu0 0.0
    %3952 = vmatpush1.msra.mxu0 0.0
    %3953 = vmatprep.subr.mxu0 0.0
    %3954 = vmatpush1.msra.mxu0 0.0
    %3955 = vmatprep.subr.mxu0 0.0
    %3956 = vmatpush1.msra.mxu0 0.0
    %3957 = vmatprep.subr.mxu0 0.0
    %3958 = vmatpush1.msra.mxu0 0.0
    %3959 = vmatprep.subr.mxu0 0.0
    %3960 = vmatpush1.msra.mxu0 0.0
    %3961 = vmatprep.subr.mxu0 0.0
    %3962 = vmatpush1.msra.mxu0 0.0
    %3963 = vmatprep.subr.mxu0 0.0
    %3964 = vmatpush1.msra.mxu0 0.0
    %3965 = vmatprep.subr.mxu0 0.0
    %3966 = vmatpush1.msra.mxu0 0.0
    %3967 = vmatprep.subr.mxu0 0.0
    %3968 = vmatpush1.msra.mxu0 0.0
    %3969 = vmatprep.subr.mxu0 0.0
    %3970 = vmatpush1.msra.mxu0 0.0
    %3971 = vmatprep.subr.mxu0 0.0
    %3972 = vmatpush1.msra.mxu0 0.0
    %3973 = vmatprep.subr.mxu0 0.0
    %3974 = vmatpush1.msra.mxu0 0.0
    %3975 = vmatprep.subr.mxu0 0.0
    %3976 = vmatpush1.msra.mxu0 0.0
    %3977 = vmatprep.subr.mxu0 0.0
    %3978 = vmatpush1.msra.mxu0 0.0
    %3979 = vmatprep.subr.mxu0 0.0
    %3980 = vmatpush1.msra.mxu0 0.0
    %3981 = vmatprep.subr.mxu0 0.0
    %3982 = vmatpush1.msra.mxu0 0.0
    %3983 = vmatprep.subr.mxu0 0.0
    %3984 = vmatpush1.msra.mxu0 0.0
    %3985 = vmatprep.subr.mxu0 0.0
    %3986 = vmatpush1.msra.mxu0 0.0
    %3987 = vmatprep.subr.mxu0 0.0
    %3988 = vmatpush1.msra.mxu0 0.0
    %3989 = vmatprep.subr.mxu0 0.0
    %3990 = vmatpush1.msra.mxu0 0.0
    %3991 = vmatprep.subr.mxu0 0.0
    %3992 = vmatpush1.msra.mxu0 0.0
    %3993 = vmatprep.subr.mxu0 0.0
    %3994 = vmatpush1.msra.mxu0 0.0
    %3995 = vmatprep.mubr.f32.mxu0 0.0
    %3996 = vmatmul.mubr.f32.gmra.mrb[0].mxu0 %v3846
    %v3997 = vpop.f32.mrb[0].mxu0
    %v3998 = vadd.f32 %v3842, %v3997
    %v3999 = vpop.f32.mrb[0].mxu0
    %v4000 = vadd.f32 %v3842, %v3999
    %4001 = vdwg.mxu0
    %4002 = vst [vmem:[#allocation5] sm:$0xff] %v3927
    %4003 = vst [vmem:[#allocation5 + $0x8] sm:$0xff] %v3929
    %s4004 = scalar_lea.vmem [#allocation5], 16
    %4005 = vst [vmem:[%s4004] sm:$0xff] %v3998
    %4006 = vst [vmem:[%s4004 + $0x8] sm:$0xff] %v4000
    // Predicated region
    $region18: #{tpu_custom_call.1} parent=1 // pred_check
      _
    $region19: #{tpu_custom_call.1} parent=1 // pred_check_branch
      %4008 = sbr.rel (0) target = $region21
    $region20: #{tpu_custom_call.1} parent=1 // pred_region
      %s4010 = ssub.s32 512, 512
      %4011 = vsyncadd [#allocation4], %s4010
      %s4012 = sshll.u32 [#allocation5], 4
      %s4013 = int_to_ptr.vmem [resolvable:$true] %s4012
      %4018 = dma.vmem_to_hbm [thread:$0]  %s4013, 512, %s3, [#allocation4], 256, 256, 16
    $region21: #{tpu_custom_call.1} parent=1 // pred_fallthru
      _
    // Predicated region
    $region22: #{tpu_custom_call.1} parent=1 // pred_check
      _
    $region23: #{tpu_custom_call.1} parent=1 // pred_check_branch
      %4020 = sbr.rel (0) target = $region25
    $region24: #{tpu_custom_call.1} parent=1 // pred_region
      %4021 = dma.done [#allocation4], 512
    $region25: #{tpu_custom_call.1} parent=1 // pred_fallthru
      _
    %4022 = vsyncpa [#allocation3], 1
    %4023 = vsyncpa [#allocation4], 1

</llo_original>
